<compile_context>
chip_gen: v7x
topology: tpu7x:2x2x1
jax: 0.10.0
libtpu: 0.0.40
codegen_flags: <defaults>
</compile_context>

<pallas_src>
import functools

import jax
import jax.numpy as jnp
from jax.experimental import pallas as pl
from jax.experimental.pallas import tpu as pltpu


def _round_up(x, m):
    return ((x + m - 1) // m) * m


def _softplus(y):
    # numerically-stable softplus: max(y, 0) + log1p(exp(-|y|))
    return jnp.maximum(y, 0.0) + jnp.log1p(jnp.exp(-jnp.abs(y)))


def _fused_mlp_kernel(*refs, num_layers, bf16_act):
    """refs = (x_ref, w0, b0, w1, b1, ..., w_{L-1}, b_{L-1}, o_ref).

    x_ref : (tm, 1)      f32 input tile (true width-1 feature dim, unpadded)
    w0    : (1, N0_pad)  f32 layer-0 weight row (zero-padded to 128 lanes)
    b0    : (1, N0_pad)  f32 layer-0 bias row   (zero-padded)
    w_l   : (K_pad, N)   bf16 weight, l >= 1 (K zero-padded; N padded except last)
    b_l   : (1, N)       f32 bias row
    o_ref : (tm, d_out)  f32 output tile (true, unpadded output width)
    All intermediates stay in vregs/VMEM — no HBM round trips between layers.
    """
    x_ref = refs[0]
    o_ref = refs[-1]

    # Layer 0: input feature dim is 1 -> pure VPU broadcast (no MXU, no padded LHS).
    y = x_ref[...] * refs[1][...] + refs[2][...]            # (tm, N0_pad) f32

    act_dtype = jnp.bfloat16 if bf16_act else jnp.float32
    for l in range(1, num_layers):
        z = _softplus(y.astype(act_dtype))                  # activation of layer l-1
        w = refs[1 + 2 * l][...]                            # bf16
        b = refs[2 + 2 * l][...]                            # f32
        y = jnp.dot(z.astype(jnp.bfloat16), w,
                    preferred_element_type=jnp.float32) + b
    o_ref[...] = y.astype(o_ref.dtype)


def init_trunk_params(key, hidden_layer_sizes):
    """Matches trunk.__init__: layer_sizes = [1] + hidden_layer_sizes,
    xavier-normal weights, zero biases.  Weights stored transposed as (in, out)
    so the kernel computes z @ W + b.  Returns f32 params and the layer dims."""
    dims = [1] + list(hidden_layer_sizes)
    params = []
    for i in range(1, len(dims)):
        fan_in, fan_out = dims[i - 1], dims[i]
        key, sub = jax.random.split(key)
        std = (2.0 / (fan_in + fan_out)) ** 0.5
        w = std * jax.random.normal(sub, (fan_out, fan_in), dtype=jnp.float32)
        b = jnp.zeros((fan_out,), dtype=jnp.float32)
        params.append((w.T, b))            # (in, out)
    return params, dims


def pad_params_for_kernel(ref_params, dims):
    """Prepare weights for the fused kernel.

    * Hidden feature dims are zero-padded up to multiples of 128 lanes so every
      MXU operand is lane-dense.  Correctness invariant (do not break if params
      are ever updated in place): padded bias entries and padded weight ROWS of
      the *next* layer must be exactly zero — padded activation columns are 0
      before the activation and softplus(0)=log2 is annihilated by those zero
      rows.
    * The width-1 input dim and the final output dim are left UNpadded.
    * MXU-layer weights (l >= 1) are stored in bf16; layer-0 weight and all
      biases stay f32.
    """
    num_layers = len(ref_params)
    kparams = []
    for l, (w_t, b) in enumerate(ref_params):
        k, n = w_t.shape
        k_pad = k if l == 0 else _round_up(k, 128)
        n_pad = n if l == num_layers - 1 else _round_up(n, 128)
        w_pad = jnp.zeros((k_pad, n_pad), jnp.float32).at[:k, :n].set(w_t)
        b_pad = jnp.zeros((1, n_pad), jnp.float32).at[0, :n].set(b)
        w_dtype = jnp.float32 if l == 0 else jnp.bfloat16
        kparams.append((w_pad.astype(w_dtype), b_pad))
    return kparams


def _device_kind():
    try:
        return jax.devices()[0].device_kind.lower()
    except Exception:
        return ""


def _supports_bf16_vpu(device_kind):
    # v5e and older have no bf16 VPU/EUP; keep f32 activation math there.
    return not any(v in device_kind for v in ("v2", "v3", "v4", "v5"))


def _pick_tile(M, device_kind):
    """Batch-tile heuristic:
      * v7x has 2 TensorCores -> keep >= 2 equal 'parallel' grid steps when M allows.
      * v5e/v6e single TC -> prefer one big step (each grid step costs ~0.35us).
      * Cap at 512 rows: tiles stay far under scoped VMEM on all generations.
    """
    cores = 2 if "v7" in device_kind else 1
    m8 = _round_up(max(M, 1), 8)
    tm = min(512, _round_up(pl.cdiv(m8, cores), 8))
    return max(tm, 8)


def trunk_forward(kernel_params, out_dim, x_loc, *, bf16_act=False,
                  single_buffer_weights=True):
    """x_loc: (M, 1) f32 -> (M, out_dim) f32 via one fused pallas_call."""
    M, d_in = x_loc.shape
    assert d_in == 1, "trunk input feature dim is 1"
    num_layers = len(kernel_params)

    kind = _device_kind()
    tm = _pick_tile(M, kind)
    M_pad = _round_up(M, tm)
    grid = (M_pad // tm,)

    x = x_loc
    if M_pad != M:                          # row padding only; width stays 1
        x = jnp.zeros((M_pad, 1), x_loc.dtype).at[:M].set(x_loc)

    # Constant-index blocks are DMA'd once and stay VMEM-resident; single-buffer
    # them so the resident-weight strategy keeps scaling (v7x VMEM is 64 MiB).
    resident = dict(pipeline_mode=pl.Buffered(1)) if single_buffer_weights else {}

    in_specs = [pl.BlockSpec((tm, 1), lambda i: (i, 0))]
    flat_inputs = [x]
    flops = 0
    transcendentals = 0
    bytes_accessed = x.size * 4 + M_pad * out_dim * 4
    for l, (w, b) in enumerate(kernel_params):
        kp, n = w.shape
        in_specs.append(pl.BlockSpec((kp, n), lambda i: (0, 0), **resident))
        in_specs.append(pl.BlockSpec((1, n), lambda i: (0, 0), **resident))
        flat_inputs += [w, b]
        flops += 2 * M_pad * kp * n
        if l < num_layers - 1:
            transcendentals += 2 * M_pad * n      # exp + log1p per softplus element
        bytes_accessed += w.size * w.dtype.itemsize + b.size * 4

    out = pl.pallas_call(
        functools.partial(_fused_mlp_kernel, num_layers=num_layers,
                          bf16_act=bf16_act),
        out_shape=jax.ShapeDtypeStruct((M_pad, out_dim), jnp.float32),
        grid_spec=pltpu.PrefetchScalarGridSpec(
            num_scalar_prefetch=0,
            grid=grid,
            in_specs=in_specs,
            out_specs=pl.BlockSpec((tm, out_dim), lambda i: (i, 0)),
        ),
        compiler_params=pltpu.CompilerParams(
            dimension_semantics=("parallel",)),
        cost_estimate=pl.CostEstimate(
            flops=int(flops),
            transcendentals=int(transcendentals),
            bytes_accessed=int(bytes_accessed)),
    )(*flat_inputs)

    return out if M_pad == M else out[:M]


def reference_forward(ref_params, x_loc):
    """Pure-JAX reference: f32 layer 0 (K=1 broadcast), bf16 MXU + f32 acc for
    the remaining layers, f32 softplus — same policy as the kernel (modulo the
    optional bf16 activation on v6e/v7x, covered by the test tolerance)."""
    z = x_loc
    L = len(ref_params)
    for idx, (w_t, b) in enumerate(ref_params):
        if idx == 0:
            y = z * w_t + b                                   # (M,1)*(1,n) broadcast, f32
        else:
            y = jnp.dot(z.astype(jnp.bfloat16), w_t.astype(jnp.bfloat16),
                        preferred_element_type=jnp.float32) + b
        if idx < L - 1:
            y = _softplus(y)
        z = y
    return z


if __name__ == "__main__":
    key = jax.random.PRNGKey(0)
    hidden_layer_sizes = [32, 32, 8]        # trunk(layer_sizes=[32, 32, 8], K=8)
    batch = 256                             # number of trunk input locations

    key, kx = jax.random.split(key)
    x_loc = jax.random.normal(kx, (batch, 1), dtype=jnp.float32)   # input dim 1

    ref_params, dims = init_trunk_params(key, hidden_layer_sizes)
    kernel_params = pad_params_for_kernel(ref_params, dims)
    out_dim = dims[-1]

    bf16_act = _supports_bf16_vpu(_device_kind())
    try:
        out = trunk_forward(kernel_params, out_dim, x_loc,
                            bf16_act=bf16_act, single_buffer_weights=True)
        out = jax.block_until_ready(out)
    except Exception:
        # Conservative fallback: f32 activations, default double-buffered specs.
        out = trunk_forward(kernel_params, out_dim, x_loc,
                            bf16_act=False, single_buffer_weights=False)
        out = jax.block_until_ready(out)

    assert out.shape == (batch, out_dim)
    assert bool(jnp.all(jnp.isfinite(out)))

    ref = reference_forward(ref_params, x_loc)
    max_err = float(jnp.max(jnp.abs(out - ref)))
    assert bool(jnp.allclose(out, ref, rtol=3e-2, atol=3e-2)), max_err

    print("KERNEL_OK")
</pallas_src>

<mosaic_0001>
module attributes {stable_mosaic.version = 11 : i64} {
  func.func @_fused_mlp_kernel(%arg0: i32, %arg1: memref<256x1xf32, #tpu.memory_space<vmem>>, %arg2: memref<1x128xf32, #tpu.memory_space<vmem>>, %arg3: memref<1x128xf32, #tpu.memory_space<vmem>>, %arg4: memref<128x128xbf16, #tpu.memory_space<vmem>>, %arg5: memref<1x128xf32, #tpu.memory_space<vmem>>, %arg6: memref<128x8xbf16, #tpu.memory_space<vmem>>, %arg7: memref<1x8xf32, #tpu.memory_space<vmem>>, %arg8: memref<256x8xf32, #tpu.memory_space<vmem>>) attributes {dimension_semantics = [#tpu.dimension_semantics<parallel>], iteration_bounds = array<i64: 1>, scalar_prefetch = 0 : i64, scratch_operands = 0 : i64, tpu.core_type = #tpu.core_type<tc>, window_params = [{transform_indices = @transform_0, window_bounds = array<i64: 256, 1>}, {pipeline_mode = #tpu.pipeline_mode<synchronous>, transform_indices = @transform_1, window_bounds = array<i64: 1, 128>}, {pipeline_mode = #tpu.pipeline_mode<synchronous>, transform_indices = @transform_2, window_bounds = array<i64: 1, 128>}, {pipeline_mode = #tpu.pipeline_mode<synchronous>, transform_indices = @transform_3, window_bounds = array<i64: 128, 128>}, {pipeline_mode = #tpu.pipeline_mode<synchronous>, transform_indices = @transform_4, window_bounds = array<i64: 1, 128>}, {pipeline_mode = #tpu.pipeline_mode<synchronous>, transform_indices = @transform_5, window_bounds = array<i64: 128, 8>}, {pipeline_mode = #tpu.pipeline_mode<synchronous>, transform_indices = @transform_6, window_bounds = array<i64: 1, 8>}, {transform_indices = @transform_7, window_bounds = array<i64: 256, 8>}]} {
    %c0 = arith.constant 0 : index
    %c0_0 = arith.constant 0 : index
    %0 = vector.load %arg1[%c0, %c0_0] : memref<256x1xf32, #tpu.memory_space<vmem>>, vector<256x1xf32>
    %c0_1 = arith.constant 0 : index
    %c0_2 = arith.constant 0 : index
    %1 = vector.load %arg2[%c0_1, %c0_2] : memref<1x128xf32, #tpu.memory_space<vmem>>, vector<1x128xf32>
    %2 = vector.broadcast %0 : vector<256x1xf32> to vector<256x128xf32>
    %3 = vector.broadcast %1 : vector<1x128xf32> to vector<256x128xf32>
    %4 = arith.mulf %2, %3 : vector<256x128xf32>
    %c0_3 = arith.constant 0 : index
    %c0_4 = arith.constant 0 : index
    %5 = vector.load %arg3[%c0_3, %c0_4] : memref<1x128xf32, #tpu.memory_space<vmem>>, vector<1x128xf32>
    %6 = vector.broadcast %5 : vector<1x128xf32> to vector<256x128xf32>
    %7 = arith.addf %4, %6 : vector<256x128xf32>
    %8 = arith.truncf %7 : vector<256x128xf32> to vector<256x128xbf16>
    %cst = arith.constant 0.000000e+00 : bf16
    %9 = vector.broadcast %cst : bf16 to vector<256x128xbf16>
    %10 = arith.maximumf %8, %9 : vector<256x128xbf16>
    %11 = math.absf %8 : vector<256x128xbf16>
    %cst_5 = arith.constant 0.000000e+00 : bf16
    %12 = vector.broadcast %cst_5 : bf16 to vector<256x128xbf16>
    %13 = arith.subf %12, %11 : vector<256x128xbf16>
    %14 = math.exp %13 : vector<256x128xbf16>
    %15 = math.log1p %14 : vector<256x128xbf16>
    %16 = arith.addf %10, %15 : vector<256x128xbf16>
    %c0_6 = arith.constant 0 : index
    %c0_7 = arith.constant 0 : index
    %17 = vector.load %arg4[%c0_6, %c0_7] : memref<128x128xbf16, #tpu.memory_space<vmem>>, vector<128x128xbf16>
    %c0_8 = arith.constant 0 : index
    %c0_9 = arith.constant 0 : index
    %18 = vector.load %arg5[%c0_8, %c0_9] : memref<1x128xf32, #tpu.memory_space<vmem>>, vector<1x128xf32>
    %cst_10 = arith.constant dense<0.000000e+00> : vector<256x128xf32>
    %19 = tpu.matmul %16, %17, %cst_10 {dimension_numbers = #tpu.dot_dimension_numbers<[1], [0], [0], [1], [0, 0, 1, 1], [], []>} : vector<256x128xbf16>, vector<128x128xbf16>, vector<256x128xf32> -> vector<256x128xf32>
    %20 = vector.broadcast %18 : vector<1x128xf32> to vector<256x128xf32>
    %21 = arith.addf %19, %20 : vector<256x128xf32>
    %22 = arith.truncf %21 : vector<256x128xf32> to vector<256x128xbf16>
    %cst_11 = arith.constant 0.000000e+00 : bf16
    %23 = vector.broadcast %cst_11 : bf16 to vector<256x128xbf16>
    %24 = arith.maximumf %22, %23 : vector<256x128xbf16>
    %25 = math.absf %22 : vector<256x128xbf16>
    %cst_12 = arith.constant 0.000000e+00 : bf16
    %26 = vector.broadcast %cst_12 : bf16 to vector<256x128xbf16>
    %27 = arith.subf %26, %25 : vector<256x128xbf16>
    %28 = math.exp %27 : vector<256x128xbf16>
    %29 = math.log1p %28 : vector<256x128xbf16>
    %30 = arith.addf %24, %29 : vector<256x128xbf16>
    %c0_13 = arith.constant 0 : index
    %c0_14 = arith.constant 0 : index
    %31 = vector.load %arg6[%c0_13, %c0_14] : memref<128x8xbf16, #tpu.memory_space<vmem>>, vector<128x8xbf16>
    %c0_15 = arith.constant 0 : index
    %c0_16 = arith.constant 0 : index
    %32 = vector.load %arg7[%c0_15, %c0_16] : memref<1x8xf32, #tpu.memory_space<vmem>>, vector<1x8xf32>
    %cst_17 = arith.constant dense<0.000000e+00> : vector<256x8xf32>
    %33 = tpu.matmul %30, %31, %cst_17 {dimension_numbers = #tpu.dot_dimension_numbers<[1], [0], [0], [1], [0, 0, 1, 1], [], []>} : vector<256x128xbf16>, vector<128x8xbf16>, vector<256x8xf32> -> vector<256x8xf32>
    %34 = vector.broadcast %32 : vector<1x8xf32> to vector<256x8xf32>
    %35 = arith.addf %33, %34 : vector<256x8xf32>
    %c0_18 = arith.constant 0 : index
    %c0_19 = arith.constant 0 : index
    %36 = vector.load %arg8[%c0_18, %c0_19] : memref<256x8xf32, #tpu.memory_space<vmem>>, vector<256x8xf32>
    tpu.vector_store %arg8[%c0_18, %c0_19], %35 {strides = array<i32>} : memref<256x8xf32, #tpu.memory_space<vmem>>, vector<256x8xf32>,
    return
  }
  func.func @transform_0(%arg0: i32) -> (i32, i32) {
    %c0_i32 = arith.constant 0 : i32
    %c0_i32_0 = arith.constant 0 : i32
    return %arg0, %c0_i32 : i32, i32
  }
  func.func @transform_1(%arg0: i32) -> (i32, i32) {
    %c0_i32 = arith.constant 0 : i32
    %c0_i32_0 = arith.constant 0 : i32
    %c0_i32_1 = arith.constant 0 : i32
    return %c0_i32, %c0_i32_0 : i32, i32
  }
  func.func @transform_2(%arg0: i32) -> (i32, i32) {
    %c0_i32 = arith.constant 0 : i32
    %c0_i32_0 = arith.constant 0 : i32
    %c0_i32_1 = arith.constant 0 : i32
    return %c0_i32, %c0_i32_0 : i32, i32
  }
  func.func @transform_3(%arg0: i32) -> (i32, i32) {
    %c0_i32 = arith.constant 0 : i32
    %c0_i32_0 = arith.constant 0 : i32
    %c0_i32_1 = arith.constant 0 : i32
    return %c0_i32, %c0_i32_0 : i32, i32
  }
  func.func @transform_4(%arg0: i32) -> (i32, i32) {
    %c0_i32 = arith.constant 0 : i32
    %c0_i32_0 = arith.constant 0 : i32
    %c0_i32_1 = arith.constant 0 : i32
    return %c0_i32, %c0_i32_0 : i32, i32
  }
  func.func @transform_5(%arg0: i32) -> (i32, i32) {
    %c0_i32 = arith.constant 0 : i32
    %c0_i32_0 = arith.constant 0 : i32
    %c0_i32_1 = arith.constant 0 : i32
    return %c0_i32, %c0_i32_0 : i32, i32
  }
  func.func @transform_6(%arg0: i32) -> (i32, i32) {
    %c0_i32 = arith.constant 0 : i32
    %c0_i32_0 = arith.constant 0 : i32
    %c0_i32_1 = arith.constant 0 : i32
    return %c0_i32, %c0_i32_0 : i32, i32
  }
  func.func @transform_7(%arg0: i32) -> (i32, i32) {
    %c0_i32 = arith.constant 0 : i32
    %c0_i32_0 = arith.constant 0 : i32
    return %arg0, %c0_i32 : i32, i32
  }
}

module attributes {stable_mosaic.version = 11 : i64} {
  func.func @_fused_mlp_kernel(%arg0: i32, %arg1: memref<256x1xf32, #tpu.memory_space<vmem>>, %arg2: memref<1x128xf32, #tpu.memory_space<vmem>>, %arg3: memref<1x128xf32, #tpu.memory_space<vmem>>, %arg4: memref<128x128xbf16, #tpu.memory_space<vmem>>, %arg5: memref<1x128xf32, #tpu.memory_space<vmem>>, %arg6: memref<128x8xbf16, #tpu.memory_space<vmem>>, %arg7: memref<1x8xf32, #tpu.memory_space<vmem>>, %arg8: memref<256x8xf32, #tpu.memory_space<vmem>>) attributes {dimension_semantics = [#tpu.dimension_semantics<parallel>], iteration_bounds = array<i64: 1>, scalar_prefetch = 0 : i64, scratch_operands = 0 : i64, tpu.core_type = #tpu.core_type<tc>, window_params = [{transform_indices = @transform_0, window_bounds = array<i64: 256, 1>}, {pipeline_mode = #tpu.pipeline_mode<synchronous>, transform_indices = @transform_1, window_bounds = array<i64: 1, 128>}, {pipeline_mode = #tpu.pipeline_mode<synchronous>, transform_indices = @transform_2, window_bounds = array<i64: 1, 128>}, {pipeline_mode = #tpu.pipeline_mode<synchronous>, transform_indices = @transform_3, window_bounds = array<i64: 128, 128>}, {pipeline_mode = #tpu.pipeline_mode<synchronous>, transform_indices = @transform_4, window_bounds = array<i64: 1, 128>}, {pipeline_mode = #tpu.pipeline_mode<synchronous>, transform_indices = @transform_5, window_bounds = array<i64: 128, 8>}, {pipeline_mode = #tpu.pipeline_mode<synchronous>, transform_indices = @transform_6, window_bounds = array<i64: 1, 8>}, {transform_indices = @transform_7, window_bounds = array<i64: 256, 8>}]} {
    %c0 = arith.constant 0 : index
    %c0_0 = arith.constant 0 : index
    %0 = vector.load %arg1[%c0, %c0_0] : memref<256x1xf32, #tpu.memory_space<vmem>>, vector<256x1xf32>
    %c0_1 = arith.constant 0 : index
    %c0_2 = arith.constant 0 : index
    %1 = vector.load %arg2[%c0_1, %c0_2] : memref<1x128xf32, #tpu.memory_space<vmem>>, vector<1x128xf32>
    %2 = vector.broadcast %0 : vector<256x1xf32> to vector<256x128xf32>
    %3 = vector.broadcast %1 : vector<1x128xf32> to vector<256x128xf32>
    %4 = arith.mulf %2, %3 : vector<256x128xf32>
    %c0_3 = arith.constant 0 : index
    %c0_4 = arith.constant 0 : index
    %5 = vector.load %arg3[%c0_3, %c0_4] : memref<1x128xf32, #tpu.memory_space<vmem>>, vector<1x128xf32>
    %6 = vector.broadcast %5 : vector<1x128xf32> to vector<256x128xf32>
    %7 = arith.addf %4, %6 : vector<256x128xf32>
    %cst = arith.constant 0.000000e+00 : f32
    %8 = vector.broadcast %cst : f32 to vector<256x128xf32>
    %9 = arith.maximumf %7, %8 : vector<256x128xf32>
    %10 = math.absf %7 : vector<256x128xf32>
    %cst_5 = arith.constant 0.000000e+00 : f32
    %11 = vector.broadcast %cst_5 : f32 to vector<256x128xf32>
    %12 = arith.subf %11, %10 : vector<256x128xf32>
    %13 = math.exp %12 : vector<256x128xf32>
    %14 = math.log1p %13 : vector<256x128xf32>
    %15 = arith.addf %9, %14 : vector<256x128xf32>
    %c0_6 = arith.constant 0 : index
    %c0_7 = arith.constant 0 : index
    %16 = vector.load %arg4[%c0_6, %c0_7] : memref<128x128xbf16, #tpu.memory_space<vmem>>, vector<128x128xbf16>
    %c0_8 = arith.constant 0 : index
    %c0_9 = arith.constant 0 : index
    %17 = vector.load %arg5[%c0_8, %c0_9] : memref<1x128xf32, #tpu.memory_space<vmem>>, vector<1x128xf32>
    %18 = arith.truncf %15 : vector<256x128xf32> to vector<256x128xbf16>
    %cst_10 = arith.constant dense<0.000000e+00> : vector<256x128xf32>
    %19 = tpu.matmul %18, %16, %cst_10 {dimension_numbers = #tpu.dot_dimension_numbers<[1], [0], [0], [1], [0, 0, 1, 1], [], []>} : vector<256x128xbf16>, vector<128x128xbf16>, vector<256x128xf32> -> vector<256x128xf32>
    %20 = vector.broadcast %17 : vector<1x128xf32> to vector<256x128xf32>
    %21 = arith.addf %19, %20 : vector<256x128xf32>
    %cst_11 = arith.constant 0.000000e+00 : f32
    %22 = vector.broadcast %cst_11 : f32 to vector<256x128xf32>
    %23 = arith.maximumf %21, %22 : vector<256x128xf32>
    %24 = math.absf %21 : vector<256x128xf32>
    %cst_12 = arith.constant 0.000000e+00 : f32
    %25 = vector.broadcast %cst_12 : f32 to vector<256x128xf32>
    %26 = arith.subf %25, %24 : vector<256x128xf32>
    %27 = math.exp %26 : vector<256x128xf32>
    %28 = math.log1p %27 : vector<256x128xf32>
    %29 = arith.addf %23, %28 : vector<256x128xf32>
    %c0_13 = arith.constant 0 : index
    %c0_14 = arith.constant 0 : index
    %30 = vector.load %arg6[%c0_13, %c0_14] : memref<128x8xbf16, #tpu.memory_space<vmem>>, vector<128x8xbf16>
    %c0_15 = arith.constant 0 : index
    %c0_16 = arith.constant 0 : index
    %31 = vector.load %arg7[%c0_15, %c0_16] : memref<1x8xf32, #tpu.memory_space<vmem>>, vector<1x8xf32>
    %32 = arith.truncf %29 : vector<256x128xf32> to vector<256x128xbf16>
    %cst_17 = arith.constant dense<0.000000e+00> : vector<256x8xf32>
    %33 = tpu.matmul %32, %30, %cst_17 {dimension_numbers = #tpu.dot_dimension_numbers<[1], [0], [0], [1], [0, 0, 1, 1], [], []>} : vector<256x128xbf16>, vector<128x8xbf16>, vector<256x8xf32> -> vector<256x8xf32>
    %34 = vector.broadcast %31 : vector<1x8xf32> to vector<256x8xf32>
    %35 = arith.addf %33, %34 : vector<256x8xf32>
    %c0_18 = arith.constant 0 : index
    %c0_19 = arith.constant 0 : index
    %36 = vector.load %arg8[%c0_18, %c0_19] : memref<256x8xf32, #tpu.memory_space<vmem>>, vector<256x8xf32>
    tpu.vector_store %arg8[%c0_18, %c0_19], %35 {strides = array<i32>} : memref<256x8xf32, #tpu.memory_space<vmem>>, vector<256x8xf32>,
    return
  }
  func.func @transform_0(%arg0: i32) -> (i32, i32) {
    %c0_i32 = arith.constant 0 : i32
    %c0_i32_0 = arith.constant 0 : i32
    return %arg0, %c0_i32 : i32, i32
  }
  func.func @transform_1(%arg0: i32) -> (i32, i32) {
    %c0_i32 = arith.constant 0 : i32
    %c0_i32_0 = arith.constant 0 : i32
    %c0_i32_1 = arith.constant 0 : i32
    return %c0_i32, %c0_i32_0 : i32, i32
  }
  func.func @transform_2(%arg0: i32) -> (i32, i32) {
    %c0_i32 = arith.constant 0 : i32
    %c0_i32_0 = arith.constant 0 : i32
    %c0_i32_1 = arith.constant 0 : i32
    return %c0_i32, %c0_i32_0 : i32, i32
  }
  func.func @transform_3(%arg0: i32) -> (i32, i32) {
    %c0_i32 = arith.constant 0 : i32
    %c0_i32_0 = arith.constant 0 : i32
    %c0_i32_1 = arith.constant 0 : i32
    return %c0_i32, %c0_i32_0 : i32, i32
  }
  func.func @transform_4(%arg0: i32) -> (i32, i32) {
    %c0_i32 = arith.constant 0 : i32
    %c0_i32_0 = arith.constant 0 : i32
    %c0_i32_1 = arith.constant 0 : i32
    return %c0_i32, %c0_i32_0 : i32, i32
  }
  func.func @transform_5(%arg0: i32) -> (i32, i32) {
    %c0_i32 = arith.constant 0 : i32
    %c0_i32_0 = arith.constant 0 : i32
    %c0_i32_1 = arith.constant 0 : i32
    return %c0_i32, %c0_i32_0 : i32, i32
  }
  func.func @transform_6(%arg0: i32) -> (i32, i32) {
    %c0_i32 = arith.constant 0 : i32
    %c0_i32_0 = arith.constant 0 : i32
    %c0_i32_1 = arith.constant 0 : i32
    return %c0_i32, %c0_i32_0 : i32, i32
  }
  func.func @transform_7(%arg0: i32) -> (i32, i32) {
    %c0_i32 = arith.constant 0 : i32
    %c0_i32_0 = arith.constant 0 : i32
    return %arg0, %c0_i32 : i32, i32
  }
}

</mosaic_0001>

<llo_original>
// kernel: tpu_custom_call.1
$region0: #{tpu_custom_call.1}
  #allocation0 [shape = 'u32[]', space=smem, size = 0x4, offset = 0x4, fixed_abs, tag = 'smem constant byte address 0x4 - core index']
  #allocation1 [shape = 'u32[144,128]{1,0:T(1,128)}', space=vmem, size = 0x12000, scoped, tag = 'internal scratch']
  %s0 = inlined_call_operand.vmem [shape: f32[256,1], index: 0, kind: input, shape index: {}]
  %s1 = inlined_call_operand.vmem [shape: f32[1,128], index: 1, kind: input, shape index: {}]
  %s2 = inlined_call_operand.vmem [shape: f32[1,128], index: 2, kind: input, shape index: {}]
  %s3 = inlined_call_operand.vmem [shape: bf16[128,128], index: 3, kind: input, shape index: {}]
  %s4 = inlined_call_operand.vmem [shape: f32[1,128], index: 4, kind: input, shape index: {}]
  %s5 = inlined_call_operand.vmem [shape: bf16[128,8], index: 5, kind: input, shape index: {}]
  %s6 = inlined_call_operand.vmem [shape: f32[1,8], index: 6, kind: input, shape index: {}]
  %s7 = inlined_call_operand.vmem [shape: f32[256,8], index: 7, kind: output, shape index: {}]
  %s8 = sld [smem:[#allocation0]]
  $region38: #{tpu_custom_call.1} parent=0
    _
  %s10 = ssub.s32 1, %s8
  %s11 = scalar_select 0, %s10, %s8
  // Predicated region
  $region2: #{tpu_custom_call.1} parent=0 // pred_check
    _
  $region3: #{tpu_custom_call.1} parent=0 // pred_check_branch
    %13 = sbr.rel (0) target = $region5
  $region4: #{tpu_custom_call.1} parent=0 // pred_region
    _
  $region5: #{tpu_custom_call.1} parent=0 // pred_fallthru
    _
  // Predicated region
  $region6: #{tpu_custom_call.1} parent=0 // pred_check
    _
  $region7: #{tpu_custom_call.1} parent=0 // pred_check_branch
    %15 = sbr.rel (0) target = $region9
  $region8: #{tpu_custom_call.1} parent=0 // pred_region
    _
  $region9: #{tpu_custom_call.1} parent=0 // pred_fallthru
    _
  // Predicated region
  $region10: #{tpu_custom_call.1} parent=0 // pred_check
    _
  $region11: #{tpu_custom_call.1} parent=0 // pred_check_branch
    %17 = sbr.rel (0) target = $region13
  $region12: #{tpu_custom_call.1} parent=0 // pred_region
    _
  $region13: #{tpu_custom_call.1} parent=0 // pred_fallthru
    _
  // Predicated region
  $region14: #{tpu_custom_call.1} parent=0 // pred_check
    _
  $region15: #{tpu_custom_call.1} parent=0 // pred_check_branch
    %19 = sbr.rel (0) target = $region17
  $region16: #{tpu_custom_call.1} parent=0 // pred_region
    _
  $region17: #{tpu_custom_call.1} parent=0 // pred_fallthru
    _
  // Predicated region
  $region18: #{tpu_custom_call.1} parent=0 // pred_check
    _
  $region19: #{tpu_custom_call.1} parent=0 // pred_check_branch
    %21 = sbr.rel (0) target = $region21
  $region20: #{tpu_custom_call.1} parent=0 // pred_region
    _
  $region21: #{tpu_custom_call.1} parent=0 // pred_fallthru
    _
  // Predicated region
  $region22: #{tpu_custom_call.1} parent=0 // pred_check
    _
  $region23: #{tpu_custom_call.1} parent=0 // pred_check_branch
    %23 = sbr.rel (0) target = $region25
  $region24: #{tpu_custom_call.1} parent=0 // pred_region
    _
  $region25: #{tpu_custom_call.1} parent=0 // pred_fallthru
    _
  // Predicated region
  $region26: #{tpu_custom_call.1} parent=0 // pred_check
    _
  $region27: #{tpu_custom_call.1} parent=0 // pred_check_branch
    %25 = sbr.rel (0) target = $region29
  $region28: #{tpu_custom_call.1} parent=0 // pred_region
    _
  $region29: #{tpu_custom_call.1} parent=0 // pred_fallthru
    _
  %v27 = vld [vmem:[%s0] sm:$0xff]
  %v28 = vld [vmem:[%s0 + $0x8] sm:$0xff]
  %v29 = vld [vmem:[%s0 + $0x10] sm:$0xff]
  %v30 = vld [vmem:[%s0 + $0x18] sm:$0xff]
  %v31 = vld [vmem:[%s0 + $0x20] sm:$0xff]
  %v32 = vld [vmem:[%s0 + $0x28] sm:$0xff]
  %v33 = vld [vmem:[%s0 + $0x30] sm:$0xff]
  %v34 = vld [vmem:[%s0 + $0x38] sm:$0xff]
  %v35 = vld [vmem:[%s0 + $0x40] sm:$0xff]
  %v36 = vld [vmem:[%s0 + $0x48] sm:$0xff]
  %v37 = vld [vmem:[%s0 + $0x50] sm:$0xff]
  %v38 = vld [vmem:[%s0 + $0x58] sm:$0xff]
  %v39 = vld [vmem:[%s0 + $0x60] sm:$0xff]
  %v40 = vld [vmem:[%s0 + $0x68] sm:$0xff]
  %v41 = vld [vmem:[%s0 + $0x70] sm:$0xff]
  %v42 = vld [vmem:[%s0 + $0x78] sm:$0xff]
  %v43 = vld [vmem:[%s0 + $0x80] sm:$0xff]
  %v44 = vld [vmem:[%s0 + $0x88] sm:$0xff]
  %v45 = vld [vmem:[%s0 + $0x90] sm:$0xff]
  %v46 = vld [vmem:[%s0 + $0x98] sm:$0xff]
  %v47 = vld [vmem:[%s0 + $0xa0] sm:$0xff]
  %v48 = vld [vmem:[%s0 + $0xa8] sm:$0xff]
  %v49 = vld [vmem:[%s0 + $0xb0] sm:$0xff]
  %v50 = vld [vmem:[%s0 + $0xb8] sm:$0xff]
  %v51 = vld [vmem:[%s0 + $0xc0] sm:$0xff]
  %v52 = vld [vmem:[%s0 + $0xc8] sm:$0xff]
  %v53 = vld [vmem:[%s0 + $0xd0] sm:$0xff]
  %v54 = vld [vmem:[%s0 + $0xd8] sm:$0xff]
  %v55 = vld [vmem:[%s0 + $0xe0] sm:$0xff]
  %v56 = vld [vmem:[%s0 + $0xe8] sm:$0xff]
  %v57 = vld [vmem:[%s0 + $0xf0] sm:$0xff]
  %v58 = vld [vmem:[%s0 + $0xf8] sm:$0xff]
  %v59 = vld [vmem:[%s1] sm:$0x1]
  %61 = vset.pattern.permute.xlu0 0
  %62 = vperm.xlu0 %61, %v27
  %v63 = vpop.permute.xlu0 %62
  %66 = vset.pattern.permute.xlu0 0
  %67 = vperm.xlu0 %66, %v28
  %v68 = vpop.permute.xlu0 %67
  %71 = vset.pattern.permute.xlu0 0
  %72 = vperm.xlu0 %71, %v29
  %v73 = vpop.permute.xlu0 %72
  %76 = vset.pattern.permute.xlu0 0
  %77 = vperm.xlu0 %76, %v30
  %v78 = vpop.permute.xlu0 %77
  %81 = vset.pattern.permute.xlu0 0
  %82 = vperm.xlu0 %81, %v31
  %v83 = vpop.permute.xlu0 %82
  %86 = vset.pattern.permute.xlu0 0
  %87 = vperm.xlu0 %86, %v32
  %v88 = vpop.permute.xlu0 %87
  %91 = vset.pattern.permute.xlu0 0
  %92 = vperm.xlu0 %91, %v33
  %v93 = vpop.permute.xlu0 %92
  %96 = vset.pattern.permute.xlu0 0
  %97 = vperm.xlu0 %96, %v34
  %v98 = vpop.permute.xlu0 %97
  %101 = vset.pattern.permute.xlu0 0
  %102 = vperm.xlu0 %101, %v35
  %v103 = vpop.permute.xlu0 %102
  %106 = vset.pattern.permute.xlu0 0
  %107 = vperm.xlu0 %106, %v36
  %v108 = vpop.permute.xlu0 %107
  %111 = vset.pattern.permute.xlu0 0
  %112 = vperm.xlu0 %111, %v37
  %v113 = vpop.permute.xlu0 %112
  %116 = vset.pattern.permute.xlu0 0
  %117 = vperm.xlu0 %116, %v38
  %v118 = vpop.permute.xlu0 %117
  %121 = vset.pattern.permute.xlu0 0
  %122 = vperm.xlu0 %121, %v39
  %v123 = vpop.permute.xlu0 %122
  %126 = vset.pattern.permute.xlu0 0
  %127 = vperm.xlu0 %126, %v40
  %v128 = vpop.permute.xlu0 %127
  %131 = vset.pattern.permute.xlu0 0
  %132 = vperm.xlu0 %131, %v41
  %v133 = vpop.permute.xlu0 %132
  %136 = vset.pattern.permute.xlu0 0
  %137 = vperm.xlu0 %136, %v42
  %v138 = vpop.permute.xlu0 %137
  %141 = vset.pattern.permute.xlu0 0
  %142 = vperm.xlu0 %141, %v43
  %v143 = vpop.permute.xlu0 %142
  %146 = vset.pattern.permute.xlu0 0
  %147 = vperm.xlu0 %146, %v44
  %v148 = vpop.permute.xlu0 %147
  %151 = vset.pattern.permute.xlu0 0
  %152 = vperm.xlu0 %151, %v45
  %v153 = vpop.permute.xlu0 %152
  %156 = vset.pattern.permute.xlu0 0
  %157 = vperm.xlu0 %156, %v46
  %v158 = vpop.permute.xlu0 %157
  %161 = vset.pattern.permute.xlu0 0
  %162 = vperm.xlu0 %161, %v47
  %v163 = vpop.permute.xlu0 %162
  %166 = vset.pattern.permute.xlu0 0
  %167 = vperm.xlu0 %166, %v48
  %v168 = vpop.permute.xlu0 %167
  %171 = vset.pattern.permute.xlu0 0
  %172 = vperm.xlu0 %171, %v49
  %v173 = vpop.permute.xlu0 %172
  %176 = vset.pattern.permute.xlu0 0
  %177 = vperm.xlu0 %176, %v50
  %v178 = vpop.permute.xlu0 %177
  %181 = vset.pattern.permute.xlu0 0
  %182 = vperm.xlu0 %181, %v51
  %v183 = vpop.permute.xlu0 %182
  %186 = vset.pattern.permute.xlu0 0
  %187 = vperm.xlu0 %186, %v52
  %v188 = vpop.permute.xlu0 %187
  %191 = vset.pattern.permute.xlu0 0
  %192 = vperm.xlu0 %191, %v53
  %v193 = vpop.permute.xlu0 %192
  %196 = vset.pattern.permute.xlu0 0
  %197 = vperm.xlu0 %196, %v54
  %v198 = vpop.permute.xlu0 %197
  %201 = vset.pattern.permute.xlu0 0
  %202 = vperm.xlu0 %201, %v55
  %v203 = vpop.permute.xlu0 %202
  %206 = vset.pattern.permute.xlu0 0
  %207 = vperm.xlu0 %206, %v56
  %v208 = vpop.permute.xlu0 %207
  %211 = vset.pattern.permute.xlu0 0
  %212 = vperm.xlu0 %211, %v57
  %v213 = vpop.permute.xlu0 %212
  %216 = vset.pattern.permute.xlu0 0
  %217 = vperm.xlu0 %216, %v58
  %v218 = vpop.permute.xlu0 %217
  %v221 = vlaneseq
  %v222 = vshrl.u32 %v221, 7
  %v223 = vsub.s32 0, %v222
  %v224 = vrot.slane %v59, %v223
  %v226 = vmul.f32 %v63, %v224
  %v227 = vmul.f32 %v68, %v224
  %v228 = vmul.f32 %v73, %v224
  %v229 = vmul.f32 %v78, %v224
  %v230 = vmul.f32 %v83, %v224
  %v231 = vmul.f32 %v88, %v224
  %v232 = vmul.f32 %v93, %v224
  %v233 = vmul.f32 %v98, %v224
  %v234 = vmul.f32 %v103, %v224
  %v235 = vmul.f32 %v108, %v224
  %v236 = vmul.f32 %v113, %v224
  %v237 = vmul.f32 %v118, %v224
  %v238 = vmul.f32 %v123, %v224
  %v239 = vmul.f32 %v128, %v224
  %v240 = vmul.f32 %v133, %v224
  %v241 = vmul.f32 %v138, %v224
  %v242 = vmul.f32 %v143, %v224
  %v243 = vmul.f32 %v148, %v224
  %v244 = vmul.f32 %v153, %v224
  %v245 = vmul.f32 %v158, %v224
  %v246 = vmul.f32 %v163, %v224
  %v247 = vmul.f32 %v168, %v224
  %v248 = vmul.f32 %v173, %v224
  %v249 = vmul.f32 %v178, %v224
  %v250 = vmul.f32 %v183, %v224
  %v251 = vmul.f32 %v188, %v224
  %v252 = vmul.f32 %v193, %v224
  %v253 = vmul.f32 %v198, %v224
  %v254 = vmul.f32 %v203, %v224
  %v255 = vmul.f32 %v208, %v224
  %v256 = vmul.f32 %v213, %v224
  %v257 = vmul.f32 %v218, %v224
  %v258 = vld [vmem:[%s2] sm:$0x1]
  %v260 = vlaneseq
  %v261 = vshrl.u32 %v260, 7
  %v262 = vsub.s32 0, %v261
  %v263 = vrot.slane %v258, %v262
  %v265 = vadd.f32 %v226, %v263
  %v266 = vadd.f32 %v227, %v263
  %v267 = vadd.f32 %v228, %v263
  %v268 = vadd.f32 %v229, %v263
  %v269 = vadd.f32 %v230, %v263
  %v270 = vadd.f32 %v231, %v263
  %v271 = vadd.f32 %v232, %v263
  %v272 = vadd.f32 %v233, %v263
  %v273 = vadd.f32 %v234, %v263
  %v274 = vadd.f32 %v235, %v263
  %v275 = vadd.f32 %v236, %v263
  %v276 = vadd.f32 %v237, %v263
  %v277 = vadd.f32 %v238, %v263
  %v278 = vadd.f32 %v239, %v263
  %v279 = vadd.f32 %v240, %v263
  %v280 = vadd.f32 %v241, %v263
  %v281 = vadd.f32 %v242, %v263
  %v282 = vadd.f32 %v243, %v263
  %v283 = vadd.f32 %v244, %v263
  %v284 = vadd.f32 %v245, %v263
  %v285 = vadd.f32 %v246, %v263
  %v286 = vadd.f32 %v247, %v263
  %v287 = vadd.f32 %v248, %v263
  %v288 = vadd.f32 %v249, %v263
  %v289 = vadd.f32 %v250, %v263
  %v290 = vadd.f32 %v251, %v263
  %v291 = vadd.f32 %v252, %v263
  %v292 = vadd.f32 %v253, %v263
  %v293 = vadd.f32 %v254, %v263
  %v294 = vadd.f32 %v255, %v263
  %v295 = vadd.f32 %v256, %v263
  %v296 = vadd.f32 %v257, %v263
  %v297 = vmax.f32 %v265, 0.0
  %v298 = vmax.f32 %v266, 0.0
  %v299 = vmax.f32 %v267, 0.0
  %v300 = vmax.f32 %v268, 0.0
  %v301 = vmax.f32 %v269, 0.0
  %v302 = vmax.f32 %v270, 0.0
  %v303 = vmax.f32 %v271, 0.0
  %v304 = vmax.f32 %v272, 0.0
  %v305 = vmax.f32 %v273, 0.0
  %v306 = vmax.f32 %v274, 0.0
  %v307 = vmax.f32 %v275, 0.0
  %v308 = vmax.f32 %v276, 0.0
  %v309 = vmax.f32 %v277, 0.0
  %v310 = vmax.f32 %v278, 0.0
  %v311 = vmax.f32 %v279, 0.0
  %v312 = vmax.f32 %v280, 0.0
  %v313 = vmax.f32 %v281, 0.0
  %v314 = vmax.f32 %v282, 0.0
  %v315 = vmax.f32 %v283, 0.0
  %v316 = vmax.f32 %v284, 0.0
  %v317 = vmax.f32 %v285, 0.0
  %v318 = vmax.f32 %v286, 0.0
  %v319 = vmax.f32 %v287, 0.0
  %v320 = vmax.f32 %v288, 0.0
  %v321 = vmax.f32 %v289, 0.0
  %v322 = vmax.f32 %v290, 0.0
  %v323 = vmax.f32 %v291, 0.0
  %v324 = vmax.f32 %v292, 0.0
  %v325 = vmax.f32 %v293, 0.0
  %v326 = vmax.f32 %v294, 0.0
  %v327 = vmax.f32 %v295, 0.0
  %v328 = vmax.f32 %v296, 0.0
  %v329 = vand.u32 2147483647, %v265
  %v330 = vand.u32 2147483647, %v266
  %v331 = vand.u32 2147483647, %v267
  %v332 = vand.u32 2147483647, %v268
  %v333 = vand.u32 2147483647, %v269
  %v334 = vand.u32 2147483647, %v270
  %v335 = vand.u32 2147483647, %v271
  %v336 = vand.u32 2147483647, %v272
  %v337 = vand.u32 2147483647, %v273
  %v338 = vand.u32 2147483647, %v274
  %v339 = vand.u32 2147483647, %v275
  %v340 = vand.u32 2147483647, %v276
  %v341 = vand.u32 2147483647, %v277
  %v342 = vand.u32 2147483647, %v278
  %v343 = vand.u32 2147483647, %v279
  %v344 = vand.u32 2147483647, %v280
  %v345 = vand.u32 2147483647, %v281
  %v346 = vand.u32 2147483647, %v282
  %v347 = vand.u32 2147483647, %v283
  %v348 = vand.u32 2147483647, %v284
  %v349 = vand.u32 2147483647, %v285
  %v350 = vand.u32 2147483647, %v286
  %v351 = vand.u32 2147483647, %v287
  %v352 = vand.u32 2147483647, %v288
  %v353 = vand.u32 2147483647, %v289
  %v354 = vand.u32 2147483647, %v290
  %v355 = vand.u32 2147483647, %v291
  %v356 = vand.u32 2147483647, %v292
  %v357 = vand.u32 2147483647, %v293
  %v358 = vand.u32 2147483647, %v294
  %v359 = vand.u32 2147483647, %v295
  %v360 = vand.u32 2147483647, %v296
  %v361 = vsub.f32 0.0, %v329
  %v362 = vsub.f32 0.0, %v330
  %v363 = vsub.f32 0.0, %v331
  %v364 = vsub.f32 0.0, %v332
  %v365 = vsub.f32 0.0, %v333
  %v366 = vsub.f32 0.0, %v334
  %v367 = vsub.f32 0.0, %v335
  %v368 = vsub.f32 0.0, %v336
  %v369 = vsub.f32 0.0, %v337
  %v370 = vsub.f32 0.0, %v338
  %v371 = vsub.f32 0.0, %v339
  %v372 = vsub.f32 0.0, %v340
  %v373 = vsub.f32 0.0, %v341
  %v374 = vsub.f32 0.0, %v342
  %v375 = vsub.f32 0.0, %v343
  %v376 = vsub.f32 0.0, %v344
  %v377 = vsub.f32 0.0, %v345
  %v378 = vsub.f32 0.0, %v346
  %v379 = vsub.f32 0.0, %v347
  %v380 = vsub.f32 0.0, %v348
  %v381 = vsub.f32 0.0, %v349
  %v382 = vsub.f32 0.0, %v350
  %v383 = vsub.f32 0.0, %v351
  %v384 = vsub.f32 0.0, %v352
  %v385 = vsub.f32 0.0, %v353
  %v386 = vsub.f32 0.0, %v354
  %v387 = vsub.f32 0.0, %v355
  %v388 = vsub.f32 0.0, %v356
  %v389 = vsub.f32 0.0, %v357
  %v390 = vsub.f32 0.0, %v358
  %v391 = vsub.f32 0.0, %v359
  %v392 = vsub.f32 0.0, %v360
  %v393 = vmul.f32 %v361, 1.442695
  %v394 = vpow.pop %v393
  %v395 = vmul.f32 %v362, 1.442695
  %v396 = vpow.pop %v395
  %v397 = vmul.f32 %v363, 1.442695
  %v398 = vpow.pop %v397
  %v399 = vmul.f32 %v364, 1.442695
  %v400 = vpow.pop %v399
  %v401 = vmul.f32 %v365, 1.442695
  %v402 = vpow.pop %v401
  %v403 = vmul.f32 %v366, 1.442695
  %v404 = vpow.pop %v403
  %v405 = vmul.f32 %v367, 1.442695
  %v406 = vpow.pop %v405
  %v407 = vmul.f32 %v368, 1.442695
  %v408 = vpow.pop %v407
  %v409 = vmul.f32 %v369, 1.442695
  %v410 = vpow.pop %v409
  %v411 = vmul.f32 %v370, 1.442695
  %v412 = vpow.pop %v411
  %v413 = vmul.f32 %v371, 1.442695
  %v414 = vpow.pop %v413
  %v415 = vmul.f32 %v372, 1.442695
  %v416 = vpow.pop %v415
  %v417 = vmul.f32 %v373, 1.442695
  %v418 = vpow.pop %v417
  %v419 = vmul.f32 %v374, 1.442695
  %v420 = vpow.pop %v419
  %v421 = vmul.f32 %v375, 1.442695
  %v422 = vpow.pop %v421
  %v423 = vmul.f32 %v376, 1.442695
  %v424 = vpow.pop %v423
  %v425 = vmul.f32 %v377, 1.442695
  %v426 = vpow.pop %v425
  %v427 = vmul.f32 %v378, 1.442695
  %v428 = vpow.pop %v427
  %v429 = vmul.f32 %v379, 1.442695
  %v430 = vpow.pop %v429
  %v431 = vmul.f32 %v380, 1.442695
  %v432 = vpow.pop %v431
  %v433 = vmul.f32 %v381, 1.442695
  %v434 = vpow.pop %v433
  %v435 = vmul.f32 %v382, 1.442695
  %v436 = vpow.pop %v435
  %v437 = vmul.f32 %v383, 1.442695
  %v438 = vpow.pop %v437
  %v439 = vmul.f32 %v384, 1.442695
  %v440 = vpow.pop %v439
  %v441 = vmul.f32 %v385, 1.442695
  %v442 = vpow.pop %v441
  %v443 = vmul.f32 %v386, 1.442695
  %v444 = vpow.pop %v443
  %v445 = vmul.f32 %v387, 1.442695
  %v446 = vpow.pop %v445
  %v447 = vmul.f32 %v388, 1.442695
  %v448 = vpow.pop %v447
  %v449 = vmul.f32 %v389, 1.442695
  %v450 = vpow.pop %v449
  %v451 = vmul.f32 %v390, 1.442695
  %v452 = vpow.pop %v451
  %v453 = vmul.f32 %v391, 1.442695
  %v454 = vpow.pop %v453
  %v455 = vmul.f32 %v392, 1.442695
  %v456 = vpow.pop %v455
  %v457 = vadd.f32 %v394, 1.0
  %v458 = vlog2.pop %v457
  %v459 = vmul.f32 %v458, 0.6931472
  %v460 = vmul.f32 -0.5, %v394
  %v461 = vadd.f32 %v460, 1.0
  %v462 = vmul.f32 %v461, %v394
  %v463 = vand.u32 2147483647, %v394
  %vm464 = vcmp.lt.f32.partialorder %v463, 0.0004427343
  %v465 = vsel %vm464, %v462, %v459
  %v466 = vadd.f32 %v396, 1.0
  %v467 = vlog2.pop %v466
  %v468 = vmul.f32 %v467, 0.6931472
  %v469 = vmul.f32 -0.5, %v396
  %v470 = vadd.f32 %v469, 1.0
  %v471 = vmul.f32 %v470, %v396
  %v472 = vand.u32 2147483647, %v396
  %vm473 = vcmp.lt.f32.partialorder %v472, 0.0004427343
  %v474 = vsel %vm473, %v471, %v468
  %v475 = vadd.f32 %v398, 1.0
  %v476 = vlog2.pop %v475
  %v477 = vmul.f32 %v476, 0.6931472
  %v478 = vmul.f32 -0.5, %v398
  %v479 = vadd.f32 %v478, 1.0
  %v480 = vmul.f32 %v479, %v398
  %v481 = vand.u32 2147483647, %v398
  %vm482 = vcmp.lt.f32.partialorder %v481, 0.0004427343
  %v483 = vsel %vm482, %v480, %v477
  %v484 = vadd.f32 %v400, 1.0
  %v485 = vlog2.pop %v484
  %v486 = vmul.f32 %v485, 0.6931472
  %v487 = vmul.f32 -0.5, %v400
  %v488 = vadd.f32 %v487, 1.0
  %v489 = vmul.f32 %v488, %v400
  %v490 = vand.u32 2147483647, %v400
  %vm491 = vcmp.lt.f32.partialorder %v490, 0.0004427343
  %v492 = vsel %vm491, %v489, %v486
  %v493 = vadd.f32 %v402, 1.0
  %v494 = vlog2.pop %v493
  %v495 = vmul.f32 %v494, 0.6931472
  %v496 = vmul.f32 -0.5, %v402
  %v497 = vadd.f32 %v496, 1.0
  %v498 = vmul.f32 %v497, %v402
  %v499 = vand.u32 2147483647, %v402
  %vm500 = vcmp.lt.f32.partialorder %v499, 0.0004427343
  %v501 = vsel %vm500, %v498, %v495
  %v502 = vadd.f32 %v404, 1.0
  %v503 = vlog2.pop %v502
  %v504 = vmul.f32 %v503, 0.6931472
  %v505 = vmul.f32 -0.5, %v404
  %v506 = vadd.f32 %v505, 1.0
  %v507 = vmul.f32 %v506, %v404
  %v508 = vand.u32 2147483647, %v404
  %vm509 = vcmp.lt.f32.partialorder %v508, 0.0004427343
  %v510 = vsel %vm509, %v507, %v504
  %v511 = vadd.f32 %v406, 1.0
  %v512 = vlog2.pop %v511
  %v513 = vmul.f32 %v512, 0.6931472
  %v514 = vmul.f32 -0.5, %v406
  %v515 = vadd.f32 %v514, 1.0
  %v516 = vmul.f32 %v515, %v406
  %v517 = vand.u32 2147483647, %v406
  %vm518 = vcmp.lt.f32.partialorder %v517, 0.0004427343
  %v519 = vsel %vm518, %v516, %v513
  %v520 = vadd.f32 %v408, 1.0
  %v521 = vlog2.pop %v520
  %v522 = vmul.f32 %v521, 0.6931472
  %v523 = vmul.f32 -0.5, %v408
  %v524 = vadd.f32 %v523, 1.0
  %v525 = vmul.f32 %v524, %v408
  %v526 = vand.u32 2147483647, %v408
  %vm527 = vcmp.lt.f32.partialorder %v526, 0.0004427343
  %v528 = vsel %vm527, %v525, %v522
  %v529 = vadd.f32 %v410, 1.0
  %v530 = vlog2.pop %v529
  %v531 = vmul.f32 %v530, 0.6931472
  %v532 = vmul.f32 -0.5, %v410
  %v533 = vadd.f32 %v532, 1.0
  %v534 = vmul.f32 %v533, %v410
  %v535 = vand.u32 2147483647, %v410
  %vm536 = vcmp.lt.f32.partialorder %v535, 0.0004427343
  %v537 = vsel %vm536, %v534, %v531
  %v538 = vadd.f32 %v412, 1.0
  %v539 = vlog2.pop %v538
  %v540 = vmul.f32 %v539, 0.6931472
  %v541 = vmul.f32 -0.5, %v412
  %v542 = vadd.f32 %v541, 1.0
  %v543 = vmul.f32 %v542, %v412
  %v544 = vand.u32 2147483647, %v412
  %vm545 = vcmp.lt.f32.partialorder %v544, 0.0004427343
  %v546 = vsel %vm545, %v543, %v540
  %v547 = vadd.f32 %v414, 1.0
  %v548 = vlog2.pop %v547
  %v549 = vmul.f32 %v548, 0.6931472
  %v550 = vmul.f32 -0.5, %v414
  %v551 = vadd.f32 %v550, 1.0
  %v552 = vmul.f32 %v551, %v414
  %v553 = vand.u32 2147483647, %v414
  %vm554 = vcmp.lt.f32.partialorder %v553, 0.0004427343
  %v555 = vsel %vm554, %v552, %v549
  %v556 = vadd.f32 %v416, 1.0
  %v557 = vlog2.pop %v556
  %v558 = vmul.f32 %v557, 0.6931472
  %v559 = vmul.f32 -0.5, %v416
  %v560 = vadd.f32 %v559, 1.0
  %v561 = vmul.f32 %v560, %v416
  %v562 = vand.u32 2147483647, %v416
  %vm563 = vcmp.lt.f32.partialorder %v562, 0.0004427343
  %v564 = vsel %vm563, %v561, %v558
  %v565 = vadd.f32 %v418, 1.0
  %v566 = vlog2.pop %v565
  %v567 = vmul.f32 %v566, 0.6931472
  %v568 = vmul.f32 -0.5, %v418
  %v569 = vadd.f32 %v568, 1.0
  %v570 = vmul.f32 %v569, %v418
  %v571 = vand.u32 2147483647, %v418
  %vm572 = vcmp.lt.f32.partialorder %v571, 0.0004427343
  %v573 = vsel %vm572, %v570, %v567
  %v574 = vadd.f32 %v420, 1.0
  %v575 = vlog2.pop %v574
  %v576 = vmul.f32 %v575, 0.6931472
  %v577 = vmul.f32 -0.5, %v420
  %v578 = vadd.f32 %v577, 1.0
  %v579 = vmul.f32 %v578, %v420
  %v580 = vand.u32 2147483647, %v420
  %vm581 = vcmp.lt.f32.partialorder %v580, 0.0004427343
  %v582 = vsel %vm581, %v579, %v576
  %v583 = vadd.f32 %v422, 1.0
  %v584 = vlog2.pop %v583
  %v585 = vmul.f32 %v584, 0.6931472
  %v586 = vmul.f32 -0.5, %v422
  %v587 = vadd.f32 %v586, 1.0
  %v588 = vmul.f32 %v587, %v422
  %v589 = vand.u32 2147483647, %v422
  %vm590 = vcmp.lt.f32.partialorder %v589, 0.0004427343
  %v591 = vsel %vm590, %v588, %v585
  %v592 = vadd.f32 %v424, 1.0
  %v593 = vlog2.pop %v592
  %v594 = vmul.f32 %v593, 0.6931472
  %v595 = vmul.f32 -0.5, %v424
  %v596 = vadd.f32 %v595, 1.0
  %v597 = vmul.f32 %v596, %v424
  %v598 = vand.u32 2147483647, %v424
  %vm599 = vcmp.lt.f32.partialorder %v598, 0.0004427343
  %v600 = vsel %vm599, %v597, %v594
  %v601 = vadd.f32 %v426, 1.0
  %v602 = vlog2.pop %v601
  %v603 = vmul.f32 %v602, 0.6931472
  %v604 = vmul.f32 -0.5, %v426
  %v605 = vadd.f32 %v604, 1.0
  %v606 = vmul.f32 %v605, %v426
  %v607 = vand.u32 2147483647, %v426
  %vm608 = vcmp.lt.f32.partialorder %v607, 0.0004427343
  %v609 = vsel %vm608, %v606, %v603
  %v610 = vadd.f32 %v428, 1.0
  %v611 = vlog2.pop %v610
  %v612 = vmul.f32 %v611, 0.6931472
  %v613 = vmul.f32 -0.5, %v428
  %v614 = vadd.f32 %v613, 1.0
  %v615 = vmul.f32 %v614, %v428
  %v616 = vand.u32 2147483647, %v428
  %vm617 = vcmp.lt.f32.partialorder %v616, 0.0004427343
  %v618 = vsel %vm617, %v615, %v612
  %v619 = vadd.f32 %v430, 1.0
  %v620 = vlog2.pop %v619
  %v621 = vmul.f32 %v620, 0.6931472
  %v622 = vmul.f32 -0.5, %v430
  %v623 = vadd.f32 %v622, 1.0
  %v624 = vmul.f32 %v623, %v430
  %v625 = vand.u32 2147483647, %v430
  %vm626 = vcmp.lt.f32.partialorder %v625, 0.0004427343
  %v627 = vsel %vm626, %v624, %v621
  %v628 = vadd.f32 %v432, 1.0
  %v629 = vlog2.pop %v628
  %v630 = vmul.f32 %v629, 0.6931472
  %v631 = vmul.f32 -0.5, %v432
  %v632 = vadd.f32 %v631, 1.0
  %v633 = vmul.f32 %v632, %v432
  %v634 = vand.u32 2147483647, %v432
  %vm635 = vcmp.lt.f32.partialorder %v634, 0.0004427343
  %v636 = vsel %vm635, %v633, %v630
  %v637 = vadd.f32 %v434, 1.0
  %v638 = vlog2.pop %v637
  %v639 = vmul.f32 %v638, 0.6931472
  %v640 = vmul.f32 -0.5, %v434
  %v641 = vadd.f32 %v640, 1.0
  %v642 = vmul.f32 %v641, %v434
  %v643 = vand.u32 2147483647, %v434
  %vm644 = vcmp.lt.f32.partialorder %v643, 0.0004427343
  %v645 = vsel %vm644, %v642, %v639
  %v646 = vadd.f32 %v436, 1.0
  %v647 = vlog2.pop %v646
  %v648 = vmul.f32 %v647, 0.6931472
  %v649 = vmul.f32 -0.5, %v436
  %v650 = vadd.f32 %v649, 1.0
  %v651 = vmul.f32 %v650, %v436
  %v652 = vand.u32 2147483647, %v436
  %vm653 = vcmp.lt.f32.partialorder %v652, 0.0004427343
  %v654 = vsel %vm653, %v651, %v648
  %v655 = vadd.f32 %v438, 1.0
  %v656 = vlog2.pop %v655
  %v657 = vmul.f32 %v656, 0.6931472
  %v658 = vmul.f32 -0.5, %v438
  %v659 = vadd.f32 %v658, 1.0
  %v660 = vmul.f32 %v659, %v438
  %v661 = vand.u32 2147483647, %v438
  %vm662 = vcmp.lt.f32.partialorder %v661, 0.0004427343
  %v663 = vsel %vm662, %v660, %v657
  %v664 = vadd.f32 %v440, 1.0
  %v665 = vlog2.pop %v664
  %v666 = vmul.f32 %v665, 0.6931472
  %v667 = vmul.f32 -0.5, %v440
  %v668 = vadd.f32 %v667, 1.0
  %v669 = vmul.f32 %v668, %v440
  %v670 = vand.u32 2147483647, %v440
  %vm671 = vcmp.lt.f32.partialorder %v670, 0.0004427343
  %v672 = vsel %vm671, %v669, %v666
  %v673 = vadd.f32 %v442, 1.0
  %v674 = vlog2.pop %v673
  %v675 = vmul.f32 %v674, 0.6931472
  %v676 = vmul.f32 -0.5, %v442
  %v677 = vadd.f32 %v676, 1.0
  %v678 = vmul.f32 %v677, %v442
  %v679 = vand.u32 2147483647, %v442
  %vm680 = vcmp.lt.f32.partialorder %v679, 0.0004427343
  %v681 = vsel %vm680, %v678, %v675
  %v682 = vadd.f32 %v444, 1.0
  %v683 = vlog2.pop %v682
  %v684 = vmul.f32 %v683, 0.6931472
  %v685 = vmul.f32 -0.5, %v444
  %v686 = vadd.f32 %v685, 1.0
  %v687 = vmul.f32 %v686, %v444
  %v688 = vand.u32 2147483647, %v444
  %vm689 = vcmp.lt.f32.partialorder %v688, 0.0004427343
  %v690 = vsel %vm689, %v687, %v684
  %v691 = vadd.f32 %v446, 1.0
  %v692 = vlog2.pop %v691
  %v693 = vmul.f32 %v692, 0.6931472
  %v694 = vmul.f32 -0.5, %v446
  %v695 = vadd.f32 %v694, 1.0
  %v696 = vmul.f32 %v695, %v446
  %v697 = vand.u32 2147483647, %v446
  %vm698 = vcmp.lt.f32.partialorder %v697, 0.0004427343
  %v699 = vsel %vm698, %v696, %v693
  %v700 = vadd.f32 %v448, 1.0
  %v701 = vlog2.pop %v700
  %v702 = vmul.f32 %v701, 0.6931472
  %v703 = vmul.f32 -0.5, %v448
  %v704 = vadd.f32 %v703, 1.0
  %v705 = vmul.f32 %v704, %v448
  %v706 = vand.u32 2147483647, %v448
  %vm707 = vcmp.lt.f32.partialorder %v706, 0.0004427343
  %v708 = vsel %vm707, %v705, %v702
  %v709 = vadd.f32 %v450, 1.0
  %v710 = vlog2.pop %v709
  %v711 = vmul.f32 %v710, 0.6931472
  %v712 = vmul.f32 -0.5, %v450
  %v713 = vadd.f32 %v712, 1.0
  %v714 = vmul.f32 %v713, %v450
  %v715 = vand.u32 2147483647, %v450
  %vm716 = vcmp.lt.f32.partialorder %v715, 0.0004427343
  %v717 = vsel %vm716, %v714, %v711
  %v718 = vadd.f32 %v452, 1.0
  %v719 = vlog2.pop %v718
  %v720 = vmul.f32 %v719, 0.6931472
  %v721 = vmul.f32 -0.5, %v452
  %v722 = vadd.f32 %v721, 1.0
  %v723 = vmul.f32 %v722, %v452
  %v724 = vand.u32 2147483647, %v452
  %vm725 = vcmp.lt.f32.partialorder %v724, 0.0004427343
  %v726 = vsel %vm725, %v723, %v720
  %v727 = vadd.f32 %v454, 1.0
  %v728 = vlog2.pop %v727
  %v729 = vmul.f32 %v728, 0.6931472
  %v730 = vmul.f32 -0.5, %v454
  %v731 = vadd.f32 %v730, 1.0
  %v732 = vmul.f32 %v731, %v454
  %v733 = vand.u32 2147483647, %v454
  %vm734 = vcmp.lt.f32.partialorder %v733, 0.0004427343
  %v735 = vsel %vm734, %v732, %v729
  %v736 = vadd.f32 %v456, 1.0
  %v737 = vlog2.pop %v736
  %v738 = vmul.f32 %v737, 0.6931472
  %v739 = vmul.f32 -0.5, %v456
  %v740 = vadd.f32 %v739, 1.0
  %v741 = vmul.f32 %v740, %v456
  %v742 = vand.u32 2147483647, %v456
  %vm743 = vcmp.lt.f32.partialorder %v742, 0.0004427343
  %v744 = vsel %vm743, %v741, %v738
  %v745 = vadd.f32 %v297, %v465
  %v746 = vadd.f32 %v298, %v474
  %v747 = vadd.f32 %v299, %v483
  %v748 = vadd.f32 %v300, %v492
  %v749 = vadd.f32 %v301, %v501
  %v750 = vadd.f32 %v302, %v510
  %v751 = vadd.f32 %v303, %v519
  %v752 = vadd.f32 %v304, %v528
  %v753 = vadd.f32 %v305, %v537
  %v754 = vadd.f32 %v306, %v546
  %v755 = vadd.f32 %v307, %v555
  %v756 = vadd.f32 %v308, %v564
  %v757 = vadd.f32 %v309, %v573
  %v758 = vadd.f32 %v310, %v582
  %v759 = vadd.f32 %v311, %v591
  %v760 = vadd.f32 %v312, %v600
  %v761 = vadd.f32 %v313, %v609
  %v762 = vadd.f32 %v314, %v618
  %v763 = vadd.f32 %v315, %v627
  %v764 = vadd.f32 %v316, %v636
  %v765 = vadd.f32 %v317, %v645
  %v766 = vadd.f32 %v318, %v654
  %v767 = vadd.f32 %v319, %v663
  %v768 = vadd.f32 %v320, %v672
  %v769 = vadd.f32 %v321, %v681
  %v770 = vadd.f32 %v322, %v690
  %v771 = vadd.f32 %v323, %v699
  %v772 = vadd.f32 %v324, %v708
  %v773 = vadd.f32 %v325, %v717
  %v774 = vadd.f32 %v326, %v726
  %v775 = vadd.f32 %v327, %v735
  %v776 = vadd.f32 %v328, %v744
  %v777 = vld [vmem:[%s3] sm:$0xf]
  %v778 = vld [vmem:[%s3 + $0x4] sm:$0xf]
  %v779 = vld [vmem:[%s3 + $0x8] sm:$0xf]
  %v780 = vld [vmem:[%s3 + $0xc] sm:$0xf]
  %v781 = vld [vmem:[%s3 + $0x10] sm:$0xf]
  %v782 = vld [vmem:[%s3 + $0x14] sm:$0xf]
  %v783 = vld [vmem:[%s3 + $0x18] sm:$0xf]
  %v784 = vld [vmem:[%s3 + $0x1c] sm:$0xf]
  %v785 = vld [vmem:[%s3 + $0x20] sm:$0xf]
  %v786 = vld [vmem:[%s3 + $0x24] sm:$0xf]
  %v787 = vld [vmem:[%s3 + $0x28] sm:$0xf]
  %v788 = vld [vmem:[%s3 + $0x2c] sm:$0xf]
  %v789 = vld [vmem:[%s3 + $0x30] sm:$0xf]
  %v790 = vld [vmem:[%s3 + $0x34] sm:$0xf]
  %v791 = vld [vmem:[%s3 + $0x38] sm:$0xf]
  %v792 = vld [vmem:[%s3 + $0x3c] sm:$0xf]
  %v793 = vld [vmem:[%s4] sm:$0x1]
  %v794 = vpack.c.bf16 %v746, %v745
  %v795 = vpack.c.bf16 %v748, %v747
  %v796 = vpack.c.bf16 %v750, %v749
  %v797 = vpack.c.bf16 %v752, %v751
  %v798 = vpack.c.bf16 %v754, %v753
  %v799 = vpack.c.bf16 %v756, %v755
  %v800 = vpack.c.bf16 %v758, %v757
  %v801 = vpack.c.bf16 %v760, %v759
  %v802 = vpack.c.bf16 %v762, %v761
  %v803 = vpack.c.bf16 %v764, %v763
  %v804 = vpack.c.bf16 %v766, %v765
  %v805 = vpack.c.bf16 %v768, %v767
  %v806 = vpack.c.bf16 %v770, %v769
  %v807 = vpack.c.bf16 %v772, %v771
  %v808 = vpack.c.bf16 %v774, %v773
  %v809 = vpack.c.bf16 %v776, %v775
  %v811 = vlaneseq
  %v812 = vshrl.u32 %v811, 7
  %v813 = vsub.s32 0, %v812
  %v814 = vrot.slane %v793, %v813
  %v832 = vunpack.c.l.b16 %v777
  %v833 = vunpack.c.l.b16 %v778
  %v834 = vunpack.c.l.b16 %v779
  %v835 = vunpack.c.l.b16 %v780
  %v836 = vunpack.c.l.b16 %v781
  %v837 = vunpack.c.l.b16 %v782
  %v838 = vunpack.c.l.b16 %v783
  %v839 = vunpack.c.l.b16 %v784
  %v840 = vunpack.c.l.b16 %v785
  %v841 = vunpack.c.l.b16 %v786
  %v842 = vunpack.c.l.b16 %v787
  %v843 = vunpack.c.l.b16 %v788
  %v844 = vunpack.c.l.b16 %v789
  %v845 = vunpack.c.l.b16 %v790
  %v846 = vunpack.c.l.b16 %v791
  %v847 = vunpack.c.l.b16 %v792
  %v848 = vpack.c.b16 %v833, %v832
  %v849 = vpack.c.b16 %v835, %v834
  %v850 = vpack.c.b16 %v837, %v836
  %v851 = vpack.c.b16 %v839, %v838
  %v852 = vpack.c.b16 %v841, %v840
  %v853 = vpack.c.b16 %v843, %v842
  %v854 = vpack.c.b16 %v845, %v844
  %v855 = vpack.c.b16 %v847, %v846
  %864 = vmatprep.subr.bf16.mxu0 0
  %865 = vmatpush1.bf16.msra.mxu0 %v848
  %866 = vmatprep.subr.bf16.mxu0 0
  %867 = vmatpush1.bf16.msra.mxu0 %v849
  %868 = vmatprep.subr.bf16.mxu0 0
  %869 = vmatpush1.bf16.msra.mxu0 %v850
  %870 = vmatprep.subr.bf16.mxu0 0
  %871 = vmatpush1.bf16.msra.mxu0 %v851
  %872 = vmatprep.subr.bf16.mxu0 0
  %873 = vmatpush1.bf16.msra.mxu0 %v852
  %874 = vmatprep.subr.bf16.mxu0 0
  %875 = vmatpush1.bf16.msra.mxu0 %v853
  %876 = vmatprep.subr.bf16.mxu0 0
  %877 = vmatpush1.bf16.msra.mxu0 %v854
  %878 = vmatprep.subr.bf16.mxu0 0
  %879 = vmatpush1.bf16.msra.mxu0 %v855
  %880 = vmatprep.subr.bf16.mxu0 0
  %881 = vmatpush1.bf16.msra.mxu0 0
  %882 = vmatprep.subr.bf16.mxu0 0
  %883 = vmatpush1.bf16.msra.mxu0 0
  %884 = vmatprep.subr.bf16.mxu0 0
  %885 = vmatpush1.bf16.msra.mxu0 0
  %886 = vmatprep.subr.bf16.mxu0 0
  %887 = vmatpush1.bf16.msra.mxu0 0
  %888 = vmatprep.subr.bf16.mxu0 0
  %889 = vmatpush1.bf16.msra.mxu0 0
  %890 = vmatprep.subr.bf16.mxu0 0
  %891 = vmatpush1.bf16.msra.mxu0 0
  %892 = vmatprep.subr.bf16.mxu0 0
  %893 = vmatpush1.bf16.msra.mxu0 0
  %894 = vmatprep.subr.bf16.mxu0 0
  %895 = vmatpush1.bf16.msra.mxu0 0
  %896 = vmatprep.mubr.bf16.mxu0 0
  %897 = vmatmul.mubr.bf16.gmra.mrb[0].mxu0 %v794
  %v898 = vpop.f32.mrb[0].mxu0
  %v899 = vadd.f32 %v814, %v898
  %v900 = vpop.f32.mrb[0].mxu0
  %v901 = vpop.f32.mrb[0].mxu0
  %v902 = vadd.f32 %v814, %v901
  %v903 = vpop.f32.mrb[0].mxu0
  %904 = vmatprep.mubr.bf16.mxu0 0
  %905 = vmatmul.mubr.bf16.gmra.mrb[0].mxu0 %v795
  %v906 = vpop.f32.mrb[0].mxu0
  %v907 = vadd.f32 %v814, %v906
  %v908 = vpop.f32.mrb[0].mxu0
  %v909 = vpop.f32.mrb[0].mxu0
  %v910 = vadd.f32 %v814, %v909
  %v911 = vpop.f32.mrb[0].mxu0
  %912 = vmatprep.mubr.bf16.mxu0 0
  %913 = vmatmul.mubr.bf16.gmra.mrb[0].mxu0 %v796
  %v914 = vpop.f32.mrb[0].mxu0
  %v915 = vadd.f32 %v814, %v914
  %v916 = vpop.f32.mrb[0].mxu0
  %v917 = vpop.f32.mrb[0].mxu0
  %v918 = vadd.f32 %v814, %v917
  %v919 = vpop.f32.mrb[0].mxu0
  %920 = vmatprep.mubr.bf16.mxu0 0
  %921 = vmatmul.mubr.bf16.gmra.mrb[0].mxu0 %v797
  %v922 = vpop.f32.mrb[0].mxu0
  %v923 = vadd.f32 %v814, %v922
  %v924 = vpop.f32.mrb[0].mxu0
  %v925 = vpop.f32.mrb[0].mxu0
  %v926 = vadd.f32 %v814, %v925
  %v927 = vpop.f32.mrb[0].mxu0
  %928 = vmatprep.mubr.bf16.mxu0 0
  %929 = vmatmul.mubr.bf16.gmra.mrb[0].mxu0 %v798
  %v930 = vpop.f32.mrb[0].mxu0
  %v931 = vadd.f32 %v814, %v930
  %v932 = vpop.f32.mrb[0].mxu0
  %v933 = vpop.f32.mrb[0].mxu0
  %v934 = vadd.f32 %v814, %v933
  %v935 = vpop.f32.mrb[0].mxu0
  %936 = vmatprep.mubr.bf16.mxu0 0
  %937 = vmatmul.mubr.bf16.gmra.mrb[0].mxu0 %v799
  %v938 = vpop.f32.mrb[0].mxu0
  %v939 = vadd.f32 %v814, %v938
  %v940 = vpop.f32.mrb[0].mxu0
  %v941 = vpop.f32.mrb[0].mxu0
  %v942 = vadd.f32 %v814, %v941
  %v943 = vpop.f32.mrb[0].mxu0
  %944 = vmatprep.mubr.bf16.mxu0 0
  %945 = vmatmul.mubr.bf16.gmra.mrb[0].mxu0 %v800
  %v946 = vpop.f32.mrb[0].mxu0
  %v947 = vadd.f32 %v814, %v946
  %v948 = vpop.f32.mrb[0].mxu0
  %v949 = vpop.f32.mrb[0].mxu0
  %v950 = vadd.f32 %v814, %v949
  %v951 = vpop.f32.mrb[0].mxu0
  %952 = vmatprep.mubr.bf16.mxu0 0
  %953 = vmatmul.mubr.bf16.gmra.mrb[0].mxu0 %v801
  %v954 = vpop.f32.mrb[0].mxu0
  %v955 = vadd.f32 %v814, %v954
  %v956 = vpop.f32.mrb[0].mxu0
  %v957 = vpop.f32.mrb[0].mxu0
  %v958 = vadd.f32 %v814, %v957
  %v959 = vpop.f32.mrb[0].mxu0
  %960 = vmatprep.mubr.bf16.mxu0 0
  %961 = vmatmul.mubr.bf16.gmra.mrb[0].mxu0 %v802
  %v962 = vpop.f32.mrb[0].mxu0
  %v963 = vadd.f32 %v814, %v962
  %v964 = vpop.f32.mrb[0].mxu0
  %v965 = vpop.f32.mrb[0].mxu0
  %v966 = vadd.f32 %v814, %v965
  %v967 = vpop.f32.mrb[0].mxu0
  %968 = vmatprep.mubr.bf16.mxu0 0
  %969 = vmatmul.mubr.bf16.gmra.mrb[0].mxu0 %v803
  %v970 = vpop.f32.mrb[0].mxu0
  %v971 = vadd.f32 %v814, %v970
  %v972 = vpop.f32.mrb[0].mxu0
  %v973 = vpop.f32.mrb[0].mxu0
  %v974 = vadd.f32 %v814, %v973
  %v975 = vpop.f32.mrb[0].mxu0
  %976 = vmatprep.mubr.bf16.mxu0 0
  %977 = vmatmul.mubr.bf16.gmra.mrb[0].mxu0 %v804
  %v978 = vpop.f32.mrb[0].mxu0
  %v979 = vadd.f32 %v814, %v978
  %v980 = vpop.f32.mrb[0].mxu0
  %v981 = vpop.f32.mrb[0].mxu0
  %v982 = vadd.f32 %v814, %v981
  %v983 = vpop.f32.mrb[0].mxu0
  %984 = vmatprep.mubr.bf16.mxu0 0
  %985 = vmatmul.mubr.bf16.gmra.mrb[0].mxu0 %v805
  %v986 = vpop.f32.mrb[0].mxu0
  %v987 = vadd.f32 %v814, %v986
  %v988 = vpop.f32.mrb[0].mxu0
  %v989 = vpop.f32.mrb[0].mxu0
  %v990 = vadd.f32 %v814, %v989
  %v991 = vpop.f32.mrb[0].mxu0
  %992 = vmatprep.mubr.bf16.mxu0 0
  %993 = vmatmul.mubr.bf16.gmra.mrb[0].mxu0 %v806
  %v994 = vpop.f32.mrb[0].mxu0
  %v995 = vadd.f32 %v814, %v994
  %v996 = vpop.f32.mrb[0].mxu0
  %v997 = vpop.f32.mrb[0].mxu0
  %v998 = vadd.f32 %v814, %v997
  %v999 = vpop.f32.mrb[0].mxu0
  %1000 = vmatprep.mubr.bf16.mxu0 0
  %1001 = vmatmul.mubr.bf16.gmra.mrb[0].mxu0 %v807
  %v1002 = vpop.f32.mrb[0].mxu0
  %v1003 = vadd.f32 %v814, %v1002
  %v1004 = vpop.f32.mrb[0].mxu0
  %v1005 = vpop.f32.mrb[0].mxu0
  %v1006 = vadd.f32 %v814, %v1005
  %v1007 = vpop.f32.mrb[0].mxu0
  %1008 = vmatprep.mubr.bf16.mxu0 0
  %1009 = vmatmul.mubr.bf16.gmra.mrb[0].mxu0 %v808
  %v1010 = vpop.f32.mrb[0].mxu0
  %v1011 = vadd.f32 %v814, %v1010
  %v1012 = vpop.f32.mrb[0].mxu0
  %v1013 = vpop.f32.mrb[0].mxu0
  %v1014 = vadd.f32 %v814, %v1013
  %v1015 = vpop.f32.mrb[0].mxu0
  %1016 = vmatprep.mubr.bf16.mxu0 0
  %1017 = vmatmul.mubr.bf16.gmra.mrb[0].mxu0 %v809
  %v1018 = vpop.f32.mrb[0].mxu0
  %v1019 = vadd.f32 %v814, %v1018
  %v1020 = vpop.f32.mrb[0].mxu0
  %v1021 = vpop.f32.mrb[0].mxu0
  %v1022 = vadd.f32 %v814, %v1021
  %v1023 = vpop.f32.mrb[0].mxu0
  %1024 = vdwg.mxu0
  %v1025 = vmax.f32 %v899, 0.0
  %v1026 = vmax.f32 %v902, 0.0
  %v1027 = vmax.f32 %v907, 0.0
  %v1028 = vmax.f32 %v910, 0.0
  %v1029 = vmax.f32 %v915, 0.0
  %v1030 = vmax.f32 %v918, 0.0
  %v1031 = vmax.f32 %v923, 0.0
  %v1032 = vmax.f32 %v926, 0.0
  %v1033 = vmax.f32 %v931, 0.0
  %v1034 = vmax.f32 %v934, 0.0
  %v1035 = vmax.f32 %v939, 0.0
  %v1036 = vmax.f32 %v942, 0.0
  %v1037 = vmax.f32 %v947, 0.0
  %v1038 = vmax.f32 %v950, 0.0
  %v1039 = vmax.f32 %v955, 0.0
  %v1040 = vmax.f32 %v958, 0.0
  %v1041 = vmax.f32 %v963, 0.0
  %v1042 = vmax.f32 %v966, 0.0
  %v1043 = vmax.f32 %v971, 0.0
  %v1044 = vmax.f32 %v974, 0.0
  %v1045 = vmax.f32 %v979, 0.0
  %v1046 = vmax.f32 %v982, 0.0
  %v1047 = vmax.f32 %v987, 0.0
  %v1048 = vmax.f32 %v990, 0.0
  %v1049 = vmax.f32 %v995, 0.0
  %v1050 = vmax.f32 %v998, 0.0
  %v1051 = vmax.f32 %v1003, 0.0
  %v1052 = vmax.f32 %v1006, 0.0
  %v1053 = vmax.f32 %v1011, 0.0
  %v1054 = vmax.f32 %v1014, 0.0
  %v1055 = vmax.f32 %v1019, 0.0
  %v1056 = vmax.f32 %v1022, 0.0
  %v1057 = vand.u32 2147483647, %v899
  %v1058 = vand.u32 2147483647, %v902
  %v1059 = vand.u32 2147483647, %v907
  %v1060 = vand.u32 2147483647, %v910
  %v1061 = vand.u32 2147483647, %v915
  %v1062 = vand.u32 2147483647, %v918
  %v1063 = vand.u32 2147483647, %v923
  %v1064 = vand.u32 2147483647, %v926
  %v1065 = vand.u32 2147483647, %v931
  %v1066 = vand.u32 2147483647, %v934
  %v1067 = vand.u32 2147483647, %v939
  %v1068 = vand.u32 2147483647, %v942
  %v1069 = vand.u32 2147483647, %v947
  %v1070 = vand.u32 2147483647, %v950
  %v1071 = vand.u32 2147483647, %v955
  %v1072 = vand.u32 2147483647, %v958
  %v1073 = vand.u32 2147483647, %v963
  %v1074 = vand.u32 2147483647, %v966
  %v1075 = vand.u32 2147483647, %v971
  %v1076 = vand.u32 2147483647, %v974
  %v1077 = vand.u32 2147483647, %v979
  %v1078 = vand.u32 2147483647, %v982
  %v1079 = vand.u32 2147483647, %v987
  %v1080 = vand.u32 2147483647, %v990
  %v1081 = vand.u32 2147483647, %v995
  %v1082 = vand.u32 2147483647, %v998
  %v1083 = vand.u32 2147483647, %v1003
  %v1084 = vand.u32 2147483647, %v1006
  %v1085 = vand.u32 2147483647, %v1011
  %v1086 = vand.u32 2147483647, %v1014
  %v1087 = vand.u32 2147483647, %v1019
  %v1088 = vand.u32 2147483647, %v1022
  %v1089 = vsub.f32 0.0, %v1057
  %v1090 = vsub.f32 0.0, %v1058
  %v1091 = vsub.f32 0.0, %v1059
  %v1092 = vsub.f32 0.0, %v1060
  %v1093 = vsub.f32 0.0, %v1061
  %v1094 = vsub.f32 0.0, %v1062
  %v1095 = vsub.f32 0.0, %v1063
  %v1096 = vsub.f32 0.0, %v1064
  %v1097 = vsub.f32 0.0, %v1065
  %v1098 = vsub.f32 0.0, %v1066
  %v1099 = vsub.f32 0.0, %v1067
  %v1100 = vsub.f32 0.0, %v1068
  %v1101 = vsub.f32 0.0, %v1069
  %v1102 = vsub.f32 0.0, %v1070
  %v1103 = vsub.f32 0.0, %v1071
  %v1104 = vsub.f32 0.0, %v1072
  %v1105 = vsub.f32 0.0, %v1073
  %v1106 = vsub.f32 0.0, %v1074
  %v1107 = vsub.f32 0.0, %v1075
  %v1108 = vsub.f32 0.0, %v1076
  %v1109 = vsub.f32 0.0, %v1077
  %v1110 = vsub.f32 0.0, %v1078
  %v1111 = vsub.f32 0.0, %v1079
  %v1112 = vsub.f32 0.0, %v1080
  %v1113 = vsub.f32 0.0, %v1081
  %v1114 = vsub.f32 0.0, %v1082
  %v1115 = vsub.f32 0.0, %v1083
  %v1116 = vsub.f32 0.0, %v1084
  %v1117 = vsub.f32 0.0, %v1085
  %v1118 = vsub.f32 0.0, %v1086
  %v1119 = vsub.f32 0.0, %v1087
  %v1120 = vsub.f32 0.0, %v1088
  %v1121 = vmul.f32 %v1089, 1.442695
  %v1122 = vpow.pop %v1121
  %v1123 = vmul.f32 %v1090, 1.442695
  %v1124 = vpow.pop %v1123
  %v1125 = vmul.f32 %v1091, 1.442695
  %v1126 = vpow.pop %v1125
  %v1127 = vmul.f32 %v1092, 1.442695
  %v1128 = vpow.pop %v1127
  %v1129 = vmul.f32 %v1093, 1.442695
  %v1130 = vpow.pop %v1129
  %v1131 = vmul.f32 %v1094, 1.442695
  %v1132 = vpow.pop %v1131
  %v1133 = vmul.f32 %v1095, 1.442695
  %v1134 = vpow.pop %v1133
  %v1135 = vmul.f32 %v1096, 1.442695
  %v1136 = vpow.pop %v1135
  %v1137 = vmul.f32 %v1097, 1.442695
  %v1138 = vpow.pop %v1137
  %v1139 = vmul.f32 %v1098, 1.442695
  %v1140 = vpow.pop %v1139
  %v1141 = vmul.f32 %v1099, 1.442695
  %v1142 = vpow.pop %v1141
  %v1143 = vmul.f32 %v1100, 1.442695
  %v1144 = vpow.pop %v1143
  %v1145 = vmul.f32 %v1101, 1.442695
  %v1146 = vpow.pop %v1145
  %v1147 = vmul.f32 %v1102, 1.442695
  %v1148 = vpow.pop %v1147
  %v1149 = vmul.f32 %v1103, 1.442695
  %v1150 = vpow.pop %v1149
  %v1151 = vmul.f32 %v1104, 1.442695
  %v1152 = vpow.pop %v1151
  %v1153 = vmul.f32 %v1105, 1.442695
  %v1154 = vpow.pop %v1153
  %v1155 = vmul.f32 %v1106, 1.442695
  %v1156 = vpow.pop %v1155
  %v1157 = vmul.f32 %v1107, 1.442695
  %v1158 = vpow.pop %v1157
  %v1159 = vmul.f32 %v1108, 1.442695
  %v1160 = vpow.pop %v1159
  %v1161 = vmul.f32 %v1109, 1.442695
  %v1162 = vpow.pop %v1161
  %v1163 = vmul.f32 %v1110, 1.442695
  %v1164 = vpow.pop %v1163
  %v1165 = vmul.f32 %v1111, 1.442695
  %v1166 = vpow.pop %v1165
  %v1167 = vmul.f32 %v1112, 1.442695
  %v1168 = vpow.pop %v1167
  %v1169 = vmul.f32 %v1113, 1.442695
  %v1170 = vpow.pop %v1169
  %v1171 = vmul.f32 %v1114, 1.442695
  %v1172 = vpow.pop %v1171
  %v1173 = vmul.f32 %v1115, 1.442695
  %v1174 = vpow.pop %v1173
  %v1175 = vmul.f32 %v1116, 1.442695
  %v1176 = vpow.pop %v1175
  %v1177 = vmul.f32 %v1117, 1.442695
  %v1178 = vpow.pop %v1177
  %v1179 = vmul.f32 %v1118, 1.442695
  %v1180 = vpow.pop %v1179
  %v1181 = vmul.f32 %v1119, 1.442695
  %v1182 = vpow.pop %v1181
  %v1183 = vmul.f32 %v1120, 1.442695
  %v1184 = vpow.pop %v1183
  %v1185 = vadd.f32 %v1122, 1.0
  %v1186 = vlog2.pop %v1185
  %v1187 = vmul.f32 %v1186, 0.6931472
  %v1188 = vmul.f32 -0.5, %v1122
  %v1189 = vadd.f32 %v1188, 1.0
  %v1190 = vmul.f32 %v1189, %v1122
  %v1191 = vand.u32 2147483647, %v1122
  %vm1192 = vcmp.lt.f32.partialorder %v1191, 0.0004427343
  %v1193 = vsel %vm1192, %v1190, %v1187
  %v1194 = vadd.f32 %v1124, 1.0
  %v1195 = vlog2.pop %v1194
  %v1196 = vmul.f32 %v1195, 0.6931472
  %v1197 = vmul.f32 -0.5, %v1124
  %v1198 = vadd.f32 %v1197, 1.0
  %v1199 = vmul.f32 %v1198, %v1124
  %v1200 = vand.u32 2147483647, %v1124
  %vm1201 = vcmp.lt.f32.partialorder %v1200, 0.0004427343
  %v1202 = vsel %vm1201, %v1199, %v1196
  %v1203 = vadd.f32 %v1126, 1.0
  %v1204 = vlog2.pop %v1203
  %v1205 = vmul.f32 %v1204, 0.6931472
  %v1206 = vmul.f32 -0.5, %v1126
  %v1207 = vadd.f32 %v1206, 1.0
  %v1208 = vmul.f32 %v1207, %v1126
  %v1209 = vand.u32 2147483647, %v1126
  %vm1210 = vcmp.lt.f32.partialorder %v1209, 0.0004427343
  %v1211 = vsel %vm1210, %v1208, %v1205
  %v1212 = vadd.f32 %v1128, 1.0
  %v1213 = vlog2.pop %v1212
  %v1214 = vmul.f32 %v1213, 0.6931472
  %v1215 = vmul.f32 -0.5, %v1128
  %v1216 = vadd.f32 %v1215, 1.0
  %v1217 = vmul.f32 %v1216, %v1128
  %v1218 = vand.u32 2147483647, %v1128
  %vm1219 = vcmp.lt.f32.partialorder %v1218, 0.0004427343
  %v1220 = vsel %vm1219, %v1217, %v1214
  %v1221 = vadd.f32 %v1130, 1.0
  %v1222 = vlog2.pop %v1221
  %v1223 = vmul.f32 %v1222, 0.6931472
  %v1224 = vmul.f32 -0.5, %v1130
  %v1225 = vadd.f32 %v1224, 1.0
  %v1226 = vmul.f32 %v1225, %v1130
  %v1227 = vand.u32 2147483647, %v1130
  %vm1228 = vcmp.lt.f32.partialorder %v1227, 0.0004427343
  %v1229 = vsel %vm1228, %v1226, %v1223
  %v1230 = vadd.f32 %v1132, 1.0
  %v1231 = vlog2.pop %v1230
  %v1232 = vmul.f32 %v1231, 0.6931472
  %v1233 = vmul.f32 -0.5, %v1132
  %v1234 = vadd.f32 %v1233, 1.0
  %v1235 = vmul.f32 %v1234, %v1132
  %v1236 = vand.u32 2147483647, %v1132
  %vm1237 = vcmp.lt.f32.partialorder %v1236, 0.0004427343
  %v1238 = vsel %vm1237, %v1235, %v1232
  %v1239 = vadd.f32 %v1134, 1.0
  %v1240 = vlog2.pop %v1239
  %v1241 = vmul.f32 %v1240, 0.6931472
  %v1242 = vmul.f32 -0.5, %v1134
  %v1243 = vadd.f32 %v1242, 1.0
  %v1244 = vmul.f32 %v1243, %v1134
  %v1245 = vand.u32 2147483647, %v1134
  %vm1246 = vcmp.lt.f32.partialorder %v1245, 0.0004427343
  %v1247 = vsel %vm1246, %v1244, %v1241
  %v1248 = vadd.f32 %v1136, 1.0
  %v1249 = vlog2.pop %v1248
  %v1250 = vmul.f32 %v1249, 0.6931472
  %v1251 = vmul.f32 -0.5, %v1136
  %v1252 = vadd.f32 %v1251, 1.0
  %v1253 = vmul.f32 %v1252, %v1136
  %v1254 = vand.u32 2147483647, %v1136
  %vm1255 = vcmp.lt.f32.partialorder %v1254, 0.0004427343
  %v1256 = vsel %vm1255, %v1253, %v1250
  %v1257 = vadd.f32 %v1138, 1.0
  %v1258 = vlog2.pop %v1257
  %v1259 = vmul.f32 %v1258, 0.6931472
  %v1260 = vmul.f32 -0.5, %v1138
  %v1261 = vadd.f32 %v1260, 1.0
  %v1262 = vmul.f32 %v1261, %v1138
  %v1263 = vand.u32 2147483647, %v1138
  %vm1264 = vcmp.lt.f32.partialorder %v1263, 0.0004427343
  %v1265 = vsel %vm1264, %v1262, %v1259
  %v1266 = vadd.f32 %v1140, 1.0
  %v1267 = vlog2.pop %v1266
  %v1268 = vmul.f32 %v1267, 0.6931472
  %v1269 = vmul.f32 -0.5, %v1140
  %v1270 = vadd.f32 %v1269, 1.0
  %v1271 = vmul.f32 %v1270, %v1140
  %v1272 = vand.u32 2147483647, %v1140
  %vm1273 = vcmp.lt.f32.partialorder %v1272, 0.0004427343
  %v1274 = vsel %vm1273, %v1271, %v1268
  %v1275 = vadd.f32 %v1142, 1.0
  %v1276 = vlog2.pop %v1275
  %v1277 = vmul.f32 %v1276, 0.6931472
  %v1278 = vmul.f32 -0.5, %v1142
  %v1279 = vadd.f32 %v1278, 1.0
  %v1280 = vmul.f32 %v1279, %v1142
  %v1281 = vand.u32 2147483647, %v1142
  %vm1282 = vcmp.lt.f32.partialorder %v1281, 0.0004427343
  %v1283 = vsel %vm1282, %v1280, %v1277
  %v1284 = vadd.f32 %v1144, 1.0
  %v1285 = vlog2.pop %v1284
  %v1286 = vmul.f32 %v1285, 0.6931472
  %v1287 = vmul.f32 -0.5, %v1144
  %v1288 = vadd.f32 %v1287, 1.0
  %v1289 = vmul.f32 %v1288, %v1144
  %v1290 = vand.u32 2147483647, %v1144
  %vm1291 = vcmp.lt.f32.partialorder %v1290, 0.0004427343
  %v1292 = vsel %vm1291, %v1289, %v1286
  %v1293 = vadd.f32 %v1146, 1.0
  %v1294 = vlog2.pop %v1293
  %v1295 = vmul.f32 %v1294, 0.6931472
  %v1296 = vmul.f32 -0.5, %v1146
  %v1297 = vadd.f32 %v1296, 1.0
  %v1298 = vmul.f32 %v1297, %v1146
  %v1299 = vand.u32 2147483647, %v1146
  %vm1300 = vcmp.lt.f32.partialorder %v1299, 0.0004427343
  %v1301 = vsel %vm1300, %v1298, %v1295
  %v1302 = vadd.f32 %v1148, 1.0
  %v1303 = vlog2.pop %v1302
  %v1304 = vmul.f32 %v1303, 0.6931472
  %v1305 = vmul.f32 -0.5, %v1148
  %v1306 = vadd.f32 %v1305, 1.0
  %v1307 = vmul.f32 %v1306, %v1148
  %v1308 = vand.u32 2147483647, %v1148
  %vm1309 = vcmp.lt.f32.partialorder %v1308, 0.0004427343
  %v1310 = vsel %vm1309, %v1307, %v1304
  %v1311 = vadd.f32 %v1150, 1.0
  %v1312 = vlog2.pop %v1311
  %v1313 = vmul.f32 %v1312, 0.6931472
  %v1314 = vmul.f32 -0.5, %v1150
  %v1315 = vadd.f32 %v1314, 1.0
  %v1316 = vmul.f32 %v1315, %v1150
  %v1317 = vand.u32 2147483647, %v1150
  %vm1318 = vcmp.lt.f32.partialorder %v1317, 0.0004427343
  %v1319 = vsel %vm1318, %v1316, %v1313
  %v1320 = vadd.f32 %v1152, 1.0
  %v1321 = vlog2.pop %v1320
  %v1322 = vmul.f32 %v1321, 0.6931472
  %v1323 = vmul.f32 -0.5, %v1152
  %v1324 = vadd.f32 %v1323, 1.0
  %v1325 = vmul.f32 %v1324, %v1152
  %v1326 = vand.u32 2147483647, %v1152
  %vm1327 = vcmp.lt.f32.partialorder %v1326, 0.0004427343
  %v1328 = vsel %vm1327, %v1325, %v1322
  %v1329 = vadd.f32 %v1154, 1.0
  %v1330 = vlog2.pop %v1329
  %v1331 = vmul.f32 %v1330, 0.6931472
  %v1332 = vmul.f32 -0.5, %v1154
  %v1333 = vadd.f32 %v1332, 1.0
  %v1334 = vmul.f32 %v1333, %v1154
  %v1335 = vand.u32 2147483647, %v1154
  %vm1336 = vcmp.lt.f32.partialorder %v1335, 0.0004427343
  %v1337 = vsel %vm1336, %v1334, %v1331
  %v1338 = vadd.f32 %v1156, 1.0
  %v1339 = vlog2.pop %v1338
  %v1340 = vmul.f32 %v1339, 0.6931472
  %v1341 = vmul.f32 -0.5, %v1156
  %v1342 = vadd.f32 %v1341, 1.0
  %v1343 = vmul.f32 %v1342, %v1156
  %v1344 = vand.u32 2147483647, %v1156
  %vm1345 = vcmp.lt.f32.partialorder %v1344, 0.0004427343
  %v1346 = vsel %vm1345, %v1343, %v1340
  %v1347 = vadd.f32 %v1158, 1.0
  %v1348 = vlog2.pop %v1347
  %v1349 = vmul.f32 %v1348, 0.6931472
  %v1350 = vmul.f32 -0.5, %v1158
  %v1351 = vadd.f32 %v1350, 1.0
  %v1352 = vmul.f32 %v1351, %v1158
  %v1353 = vand.u32 2147483647, %v1158
  %vm1354 = vcmp.lt.f32.partialorder %v1353, 0.0004427343
  %v1355 = vsel %vm1354, %v1352, %v1349
  %v1356 = vadd.f32 %v1160, 1.0
  %v1357 = vlog2.pop %v1356
  %v1358 = vmul.f32 %v1357, 0.6931472
  %v1359 = vmul.f32 -0.5, %v1160
  %v1360 = vadd.f32 %v1359, 1.0
  %v1361 = vmul.f32 %v1360, %v1160
  %v1362 = vand.u32 2147483647, %v1160
  %vm1363 = vcmp.lt.f32.partialorder %v1362, 0.0004427343
  %v1364 = vsel %vm1363, %v1361, %v1358
  %v1365 = vadd.f32 %v1162, 1.0
  %v1366 = vlog2.pop %v1365
  %v1367 = vmul.f32 %v1366, 0.6931472
  %v1368 = vmul.f32 -0.5, %v1162
  %v1369 = vadd.f32 %v1368, 1.0
  %v1370 = vmul.f32 %v1369, %v1162
  %v1371 = vand.u32 2147483647, %v1162
  %vm1372 = vcmp.lt.f32.partialorder %v1371, 0.0004427343
  %v1373 = vsel %vm1372, %v1370, %v1367
  %v1374 = vadd.f32 %v1164, 1.0
  %v1375 = vlog2.pop %v1374
  %v1376 = vmul.f32 %v1375, 0.6931472
  %v1377 = vmul.f32 -0.5, %v1164
  %v1378 = vadd.f32 %v1377, 1.0
  %v1379 = vmul.f32 %v1378, %v1164
  %v1380 = vand.u32 2147483647, %v1164
  %vm1381 = vcmp.lt.f32.partialorder %v1380, 0.0004427343
  %v1382 = vsel %vm1381, %v1379, %v1376
  %v1383 = vadd.f32 %v1166, 1.0
  %v1384 = vlog2.pop %v1383
  %v1385 = vmul.f32 %v1384, 0.6931472
  %v1386 = vmul.f32 -0.5, %v1166
  %v1387 = vadd.f32 %v1386, 1.0
  %v1388 = vmul.f32 %v1387, %v1166
  %v1389 = vand.u32 2147483647, %v1166
  %vm1390 = vcmp.lt.f32.partialorder %v1389, 0.0004427343
  %v1391 = vsel %vm1390, %v1388, %v1385
  %v1392 = vadd.f32 %v1168, 1.0
  %v1393 = vlog2.pop %v1392
  %v1394 = vmul.f32 %v1393, 0.6931472
  %v1395 = vmul.f32 -0.5, %v1168
  %v1396 = vadd.f32 %v1395, 1.0
  %v1397 = vmul.f32 %v1396, %v1168
  %v1398 = vand.u32 2147483647, %v1168
  %vm1399 = vcmp.lt.f32.partialorder %v1398, 0.0004427343
  %v1400 = vsel %vm1399, %v1397, %v1394
  %v1401 = vadd.f32 %v1170, 1.0
  %v1402 = vlog2.pop %v1401
  %v1403 = vmul.f32 %v1402, 0.6931472
  %v1404 = vmul.f32 -0.5, %v1170
  %v1405 = vadd.f32 %v1404, 1.0
  %v1406 = vmul.f32 %v1405, %v1170
  %v1407 = vand.u32 2147483647, %v1170
  %vm1408 = vcmp.lt.f32.partialorder %v1407, 0.0004427343
  %v1409 = vsel %vm1408, %v1406, %v1403
  %v1410 = vadd.f32 %v1172, 1.0
  %v1411 = vlog2.pop %v1410
  %v1412 = vmul.f32 %v1411, 0.6931472
  %v1413 = vmul.f32 -0.5, %v1172
  %v1414 = vadd.f32 %v1413, 1.0
  %v1415 = vmul.f32 %v1414, %v1172
  %v1416 = vand.u32 2147483647, %v1172
  %vm1417 = vcmp.lt.f32.partialorder %v1416, 0.0004427343
  %v1418 = vsel %vm1417, %v1415, %v1412
  %v1419 = vadd.f32 %v1174, 1.0
  %v1420 = vlog2.pop %v1419
  %v1421 = vmul.f32 %v1420, 0.6931472
  %v1422 = vmul.f32 -0.5, %v1174
  %v1423 = vadd.f32 %v1422, 1.0
  %v1424 = vmul.f32 %v1423, %v1174
  %v1425 = vand.u32 2147483647, %v1174
  %vm1426 = vcmp.lt.f32.partialorder %v1425, 0.0004427343
  %v1427 = vsel %vm1426, %v1424, %v1421
  %v1428 = vadd.f32 %v1176, 1.0
  %v1429 = vlog2.pop %v1428
  %v1430 = vmul.f32 %v1429, 0.6931472
  %v1431 = vmul.f32 -0.5, %v1176
  %v1432 = vadd.f32 %v1431, 1.0
  %v1433 = vmul.f32 %v1432, %v1176
  %v1434 = vand.u32 2147483647, %v1176
  %vm1435 = vcmp.lt.f32.partialorder %v1434, 0.0004427343
  %v1436 = vsel %vm1435, %v1433, %v1430
  %v1437 = vadd.f32 %v1178, 1.0
  %v1438 = vlog2.pop %v1437
  %v1439 = vmul.f32 %v1438, 0.6931472
  %v1440 = vmul.f32 -0.5, %v1178
  %v1441 = vadd.f32 %v1440, 1.0
  %v1442 = vmul.f32 %v1441, %v1178
  %v1443 = vand.u32 2147483647, %v1178
  %vm1444 = vcmp.lt.f32.partialorder %v1443, 0.0004427343
  %v1445 = vsel %vm1444, %v1442, %v1439
  %v1446 = vadd.f32 %v1180, 1.0
  %v1447 = vlog2.pop %v1446
  %v1448 = vmul.f32 %v1447, 0.6931472
  %v1449 = vmul.f32 -0.5, %v1180
  %v1450 = vadd.f32 %v1449, 1.0
  %v1451 = vmul.f32 %v1450, %v1180
  %v1452 = vand.u32 2147483647, %v1180
  %vm1453 = vcmp.lt.f32.partialorder %v1452, 0.0004427343
  %v1454 = vsel %vm1453, %v1451, %v1448
  %v1455 = vadd.f32 %v1182, 1.0
  %v1456 = vlog2.pop %v1455
  %v1457 = vmul.f32 %v1456, 0.6931472
  %v1458 = vmul.f32 -0.5, %v1182
  %v1459 = vadd.f32 %v1458, 1.0
  %v1460 = vmul.f32 %v1459, %v1182
  %v1461 = vand.u32 2147483647, %v1182
  %vm1462 = vcmp.lt.f32.partialorder %v1461, 0.0004427343
  %v1463 = vsel %vm1462, %v1460, %v1457
  %v1464 = vadd.f32 %v1184, 1.0
  %v1465 = vlog2.pop %v1464
  %v1466 = vmul.f32 %v1465, 0.6931472
  %v1467 = vmul.f32 -0.5, %v1184
  %v1468 = vadd.f32 %v1467, 1.0
  %v1469 = vmul.f32 %v1468, %v1184
  %v1470 = vand.u32 2147483647, %v1184
  %vm1471 = vcmp.lt.f32.partialorder %v1470, 0.0004427343
  %v1472 = vsel %vm1471, %v1469, %v1466
  %v1473 = vadd.f32 %v1025, %v1193
  %v1474 = vadd.f32 %v1026, %v1202
  %v1475 = vadd.f32 %v1027, %v1211
  %v1476 = vadd.f32 %v1028, %v1220
  %v1477 = vadd.f32 %v1029, %v1229
  %v1478 = vadd.f32 %v1030, %v1238
  %v1479 = vadd.f32 %v1031, %v1247
  %v1480 = vadd.f32 %v1032, %v1256
  %v1481 = vadd.f32 %v1033, %v1265
  %v1482 = vadd.f32 %v1034, %v1274
  %v1483 = vadd.f32 %v1035, %v1283
  %v1484 = vadd.f32 %v1036, %v1292
  %v1485 = vadd.f32 %v1037, %v1301
  %v1486 = vadd.f32 %v1038, %v1310
  %v1487 = vadd.f32 %v1039, %v1319
  %v1488 = vadd.f32 %v1040, %v1328
  %v1489 = vadd.f32 %v1041, %v1337
  %v1490 = vadd.f32 %v1042, %v1346
  %v1491 = vadd.f32 %v1043, %v1355
  %v1492 = vadd.f32 %v1044, %v1364
  %v1493 = vadd.f32 %v1045, %v1373
  %v1494 = vadd.f32 %v1046, %v1382
  %v1495 = vadd.f32 %v1047, %v1391
  %v1496 = vadd.f32 %v1048, %v1400
  %v1497 = vadd.f32 %v1049, %v1409
  %v1498 = vadd.f32 %v1050, %v1418
  %v1499 = vadd.f32 %v1051, %v1427
  %v1500 = vadd.f32 %v1052, %v1436
  %v1501 = vadd.f32 %v1053, %v1445
  %v1502 = vadd.f32 %v1054, %v1454
  %v1503 = vadd.f32 %v1055, %v1463
  %v1504 = vadd.f32 %v1056, %v1472
  %v1505 = vld [vmem:[%s5] sm:$0xf]
  %v1506 = vld [vmem:[%s5 + $0x4] sm:$0xf]
  %v1507 = vld [vmem:[%s5 + $0x8] sm:$0xf]
  %v1508 = vld [vmem:[%s5 + $0xc] sm:$0xf]
  %v1509 = vld [vmem:[%s5 + $0x10] sm:$0xf]
  %v1510 = vld [vmem:[%s5 + $0x14] sm:$0xf]
  %v1511 = vld [vmem:[%s5 + $0x18] sm:$0xf]
  %v1512 = vld [vmem:[%s5 + $0x1c] sm:$0xf]
  %v1513 = vld [vmem:[%s5 + $0x20] sm:$0xf]
  %v1514 = vld [vmem:[%s5 + $0x24] sm:$0xf]
  %v1515 = vld [vmem:[%s5 + $0x28] sm:$0xf]
  %v1516 = vld [vmem:[%s5 + $0x2c] sm:$0xf]
  %v1517 = vld [vmem:[%s5 + $0x30] sm:$0xf]
  %v1518 = vld [vmem:[%s5 + $0x34] sm:$0xf]
  %v1519 = vld [vmem:[%s5 + $0x38] sm:$0xf]
  %v1520 = vld [vmem:[%s5 + $0x3c] sm:$0xf]
  %v1521 = vld [vmem:[%s6] sm:$0x1]
  %v1522 = vpack.c.bf16 %v1474, %v1473
  %v1523 = vpack.c.bf16 %v1476, %v1475
  %v1524 = vpack.c.bf16 %v1478, %v1477
  %v1525 = vpack.c.bf16 %v1480, %v1479
  %v1526 = vpack.c.bf16 %v1482, %v1481
  %v1527 = vpack.c.bf16 %v1484, %v1483
  %v1528 = vpack.c.bf16 %v1486, %v1485
  %v1529 = vpack.c.bf16 %v1488, %v1487
  %v1530 = vpack.c.bf16 %v1490, %v1489
  %v1531 = vpack.c.bf16 %v1492, %v1491
  %v1532 = vpack.c.bf16 %v1494, %v1493
  %v1533 = vpack.c.bf16 %v1496, %v1495
  %v1534 = vpack.c.bf16 %v1498, %v1497
  %v1535 = vpack.c.bf16 %v1500, %v1499
  %v1536 = vpack.c.bf16 %v1502, %v1501
  %v1537 = vpack.c.bf16 %v1504, %v1503
  %v1539 = vlaneseq
  %v1540 = vshrl.u32 %v1539, 7
  %v1541 = vsub.s32 0, %v1540
  %v1542 = vrot.slane %v1521, %v1541
  %v1560 = vunpack.c.l.b16 %v1505
  %v1561 = vunpack.c.l.b16 %v1506
  %v1562 = vunpack.c.l.b16 %v1507
  %v1563 = vunpack.c.l.b16 %v1508
  %v1564 = vunpack.c.l.b16 %v1509
  %v1565 = vunpack.c.l.b16 %v1510
  %v1566 = vunpack.c.l.b16 %v1511
  %v1567 = vunpack.c.l.b16 %v1512
  %v1568 = vunpack.c.l.b16 %v1513
  %v1569 = vunpack.c.l.b16 %v1514
  %v1570 = vunpack.c.l.b16 %v1515
  %v1571 = vunpack.c.l.b16 %v1516
  %v1572 = vunpack.c.l.b16 %v1517
  %v1573 = vunpack.c.l.b16 %v1518
  %v1574 = vunpack.c.l.b16 %v1519
  %v1575 = vunpack.c.l.b16 %v1520
  %v1576 = vpack.c.b16 %v1561, %v1560
  %v1577 = vpack.c.b16 %v1563, %v1562
  %v1578 = vpack.c.b16 %v1565, %v1564
  %v1579 = vpack.c.b16 %v1567, %v1566
  %v1580 = vpack.c.b16 %v1569, %v1568
  %v1581 = vpack.c.b16 %v1571, %v1570
  %v1582 = vpack.c.b16 %v1573, %v1572
  %v1583 = vpack.c.b16 %v1575, %v1574
  %1592 = vmatprep.subr.bf16.mxu0 0
  %1593 = vmatpush1.bf16.msra.mxu0 %v1576
  %1594 = vmatprep.subr.bf16.mxu0 0
  %1595 = vmatpush1.bf16.msra.mxu0 %v1577
  %1596 = vmatprep.subr.bf16.mxu0 0
  %1597 = vmatpush1.bf16.msra.mxu0 %v1578
  %1598 = vmatprep.subr.bf16.mxu0 0
  %1599 = vmatpush1.bf16.msra.mxu0 %v1579
  %1600 = vmatprep.subr.bf16.mxu0 0
  %1601 = vmatpush1.bf16.msra.mxu0 %v1580
  %1602 = vmatprep.subr.bf16.mxu0 0
  %1603 = vmatpush1.bf16.msra.mxu0 %v1581
  %1604 = vmatprep.subr.bf16.mxu0 0
  %1605 = vmatpush1.bf16.msra.mxu0 %v1582
  %1606 = vmatprep.subr.bf16.mxu0 0
  %1607 = vmatpush1.bf16.msra.mxu0 %v1583
  %1608 = vmatprep.subr.bf16.mxu0 0
  %1609 = vmatpush1.bf16.msra.mxu0 0
  %1610 = vmatprep.subr.bf16.mxu0 0
  %1611 = vmatpush1.bf16.msra.mxu0 0
  %1612 = vmatprep.subr.bf16.mxu0 0
  %1613 = vmatpush1.bf16.msra.mxu0 0
  %1614 = vmatprep.subr.bf16.mxu0 0
  %1615 = vmatpush1.bf16.msra.mxu0 0
  %1616 = vmatprep.subr.bf16.mxu0 0
  %1617 = vmatpush1.bf16.msra.mxu0 0
  %1618 = vmatprep.subr.bf16.mxu0 0
  %1619 = vmatpush1.bf16.msra.mxu0 0
  %1620 = vmatprep.subr.bf16.mxu0 0
  %1621 = vmatpush1.bf16.msra.mxu0 0
  %1622 = vmatprep.subr.bf16.mxu0 0
  %1623 = vmatpush1.bf16.msra.mxu0 0
  %1624 = vmatprep.mubr.bf16.mxu0 0
  %1625 = vmatmul.mubr.bf16.gmra.mrb[0].mxu0 %v1522
  %v1626 = vpop.f32.mrb[0].mxu0
  %v1627 = vadd.f32 %v1542, %v1626
  %v1628 = vpop.f32.mrb[0].mxu0
  %v1629 = vpop.f32.mrb[0].mxu0
  %v1630 = vadd.f32 %v1542, %v1629
  %v1631 = vpop.f32.mrb[0].mxu0
  %1632 = vmatprep.mubr.bf16.mxu0 0
  %1633 = vmatmul.mubr.bf16.gmra.mrb[0].mxu0 %v1523
  %v1634 = vpop.f32.mrb[0].mxu0
  %v1635 = vadd.f32 %v1542, %v1634
  %v1636 = vpop.f32.mrb[0].mxu0
  %v1637 = vpop.f32.mrb[0].mxu0
  %v1638 = vadd.f32 %v1542, %v1637
  %v1639 = vpop.f32.mrb[0].mxu0
  %1640 = vmatprep.mubr.bf16.mxu0 0
  %1641 = vmatmul.mubr.bf16.gmra.mrb[0].mxu0 %v1524
  %v1642 = vpop.f32.mrb[0].mxu0
  %v1643 = vadd.f32 %v1542, %v1642
  %v1644 = vpop.f32.mrb[0].mxu0
  %v1645 = vpop.f32.mrb[0].mxu0
  %v1646 = vadd.f32 %v1542, %v1645
  %v1647 = vpop.f32.mrb[0].mxu0
  %1648 = vmatprep.mubr.bf16.mxu0 0
  %1649 = vmatmul.mubr.bf16.gmra.mrb[0].mxu0 %v1525
  %v1650 = vpop.f32.mrb[0].mxu0
  %v1651 = vadd.f32 %v1542, %v1650
  %v1652 = vpop.f32.mrb[0].mxu0
  %v1653 = vpop.f32.mrb[0].mxu0
  %v1654 = vadd.f32 %v1542, %v1653
  %v1655 = vpop.f32.mrb[0].mxu0
  %1656 = vmatprep.mubr.bf16.mxu0 0
  %1657 = vmatmul.mubr.bf16.gmra.mrb[0].mxu0 %v1526
  %v1658 = vpop.f32.mrb[0].mxu0
  %v1659 = vadd.f32 %v1542, %v1658
  %v1660 = vpop.f32.mrb[0].mxu0
  %v1661 = vpop.f32.mrb[0].mxu0
  %v1662 = vadd.f32 %v1542, %v1661
  %v1663 = vpop.f32.mrb[0].mxu0
  %1664 = vmatprep.mubr.bf16.mxu0 0
  %1665 = vmatmul.mubr.bf16.gmra.mrb[0].mxu0 %v1527
  %v1666 = vpop.f32.mrb[0].mxu0
  %v1667 = vadd.f32 %v1542, %v1666
  %v1668 = vpop.f32.mrb[0].mxu0
  %v1669 = vpop.f32.mrb[0].mxu0
  %v1670 = vadd.f32 %v1542, %v1669
  %v1671 = vpop.f32.mrb[0].mxu0
  %1672 = vmatprep.mubr.bf16.mxu0 0
  %1673 = vmatmul.mubr.bf16.gmra.mrb[0].mxu0 %v1528
  %v1674 = vpop.f32.mrb[0].mxu0
  %v1675 = vadd.f32 %v1542, %v1674
  %v1676 = vpop.f32.mrb[0].mxu0
  %v1677 = vpop.f32.mrb[0].mxu0
  %v1678 = vadd.f32 %v1542, %v1677
  %v1679 = vpop.f32.mrb[0].mxu0
  %1680 = vmatprep.mubr.bf16.mxu0 0
  %1681 = vmatmul.mubr.bf16.gmra.mrb[0].mxu0 %v1529
  %v1682 = vpop.f32.mrb[0].mxu0
  %v1683 = vadd.f32 %v1542, %v1682
  %v1684 = vpop.f32.mrb[0].mxu0
  %v1685 = vpop.f32.mrb[0].mxu0
  %v1686 = vadd.f32 %v1542, %v1685
  %v1687 = vpop.f32.mrb[0].mxu0
  %1688 = vmatprep.mubr.bf16.mxu0 0
  %1689 = vmatmul.mubr.bf16.gmra.mrb[0].mxu0 %v1530
  %v1690 = vpop.f32.mrb[0].mxu0
  %v1691 = vadd.f32 %v1542, %v1690
  %v1692 = vpop.f32.mrb[0].mxu0
  %v1693 = vpop.f32.mrb[0].mxu0
  %v1694 = vadd.f32 %v1542, %v1693
  %v1695 = vpop.f32.mrb[0].mxu0
  %1696 = vmatprep.mubr.bf16.mxu0 0
  %1697 = vmatmul.mubr.bf16.gmra.mrb[0].mxu0 %v1531
  %v1698 = vpop.f32.mrb[0].mxu0
  %v1699 = vadd.f32 %v1542, %v1698
  %v1700 = vpop.f32.mrb[0].mxu0
  %v1701 = vpop.f32.mrb[0].mxu0
  %v1702 = vadd.f32 %v1542, %v1701
  %v1703 = vpop.f32.mrb[0].mxu0
  %1704 = vmatprep.mubr.bf16.mxu0 0
  %1705 = vmatmul.mubr.bf16.gmra.mrb[0].mxu0 %v1532
  %v1706 = vpop.f32.mrb[0].mxu0
  %v1707 = vadd.f32 %v1542, %v1706
  %v1708 = vpop.f32.mrb[0].mxu0
  %v1709 = vpop.f32.mrb[0].mxu0
  %v1710 = vadd.f32 %v1542, %v1709
  %v1711 = vpop.f32.mrb[0].mxu0
  %1712 = vmatprep.mubr.bf16.mxu0 0
  %1713 = vmatmul.mubr.bf16.gmra.mrb[0].mxu0 %v1533
  %v1714 = vpop.f32.mrb[0].mxu0
  %v1715 = vadd.f32 %v1542, %v1714
  %v1716 = vpop.f32.mrb[0].mxu0
  %v1717 = vpop.f32.mrb[0].mxu0
  %v1718 = vadd.f32 %v1542, %v1717
  %v1719 = vpop.f32.mrb[0].mxu0
  %1720 = vmatprep.mubr.bf16.mxu0 0
  %1721 = vmatmul.mubr.bf16.gmra.mrb[0].mxu0 %v1534
  %v1722 = vpop.f32.mrb[0].mxu0
  %v1723 = vadd.f32 %v1542, %v1722
  %v1724 = vpop.f32.mrb[0].mxu0
  %v1725 = vpop.f32.mrb[0].mxu0
  %v1726 = vadd.f32 %v1542, %v1725
  %v1727 = vpop.f32.mrb[0].mxu0
  %1728 = vmatprep.mubr.bf16.mxu0 0
  %1729 = vmatmul.mubr.bf16.gmra.mrb[0].mxu0 %v1535
  %v1730 = vpop.f32.mrb[0].mxu0
  %v1731 = vadd.f32 %v1542, %v1730
  %v1732 = vpop.f32.mrb[0].mxu0
  %v1733 = vpop.f32.mrb[0].mxu0
  %v1734 = vadd.f32 %v1542, %v1733
  %v1735 = vpop.f32.mrb[0].mxu0
  %1736 = vmatprep.mubr.bf16.mxu0 0
  %1737 = vmatmul.mubr.bf16.gmra.mrb[0].mxu0 %v1536
  %v1738 = vpop.f32.mrb[0].mxu0
  %v1739 = vadd.f32 %v1542, %v1738
  %v1740 = vpop.f32.mrb[0].mxu0
  %v1741 = vpop.f32.mrb[0].mxu0
  %v1742 = vadd.f32 %v1542, %v1741
  %v1743 = vpop.f32.mrb[0].mxu0
  %1744 = vmatprep.mubr.bf16.mxu0 0
  %1745 = vmatmul.mubr.bf16.gmra.mrb[0].mxu0 %v1537
  %v1746 = vpop.f32.mrb[0].mxu0
  %v1747 = vadd.f32 %v1542, %v1746
  %v1748 = vpop.f32.mrb[0].mxu0
  %v1749 = vpop.f32.mrb[0].mxu0
  %v1750 = vadd.f32 %v1542, %v1749
  %v1751 = vpop.f32.mrb[0].mxu0
  %1752 = vdwg.mxu0
  %vm1753 = vcmask 64512
  %1754 = vst.msk [vmem:[%s7] sm:$0xff] %vm1753, %v1627
  %1755 = vst.msk [vmem:[%s7 + $0x8] sm:$0xff] %vm1753, %v1630
  %1756 = vst.msk [vmem:[%s7 + $0x10] sm:$0xff] %vm1753, %v1635
  %1757 = vst.msk [vmem:[%s7 + $0x18] sm:$0xff] %vm1753, %v1638
  %1758 = vst.msk [vmem:[%s7 + $0x20] sm:$0xff] %vm1753, %v1643
  %1759 = vst.msk [vmem:[%s7 + $0x28] sm:$0xff] %vm1753, %v1646
  %1760 = vst.msk [vmem:[%s7 + $0x30] sm:$0xff] %vm1753, %v1651
  %1761 = vst.msk [vmem:[%s7 + $0x38] sm:$0xff] %vm1753, %v1654
  %1762 = vst.msk [vmem:[%s7 + $0x40] sm:$0xff] %vm1753, %v1659
  %1763 = vst.msk [vmem:[%s7 + $0x48] sm:$0xff] %vm1753, %v1662
  %1764 = vst.msk [vmem:[%s7 + $0x50] sm:$0xff] %vm1753, %v1667
  %1765 = vst.msk [vmem:[%s7 + $0x58] sm:$0xff] %vm1753, %v1670
  %1766 = vst.msk [vmem:[%s7 + $0x60] sm:$0xff] %vm1753, %v1675
  %1767 = vst.msk [vmem:[%s7 + $0x68] sm:$0xff] %vm1753, %v1678
  %1768 = vst.msk [vmem:[%s7 + $0x70] sm:$0xff] %vm1753, %v1683
  %1769 = vst.msk [vmem:[%s7 + $0x78] sm:$0xff] %vm1753, %v1686
  %1770 = vst.msk [vmem:[%s7 + $0x80] sm:$0xff] %vm1753, %v1691
  %1771 = vst.msk [vmem:[%s7 + $0x88] sm:$0xff] %vm1753, %v1694
  %1772 = vst.msk [vmem:[%s7 + $0x90] sm:$0xff] %vm1753, %v1699
  %1773 = vst.msk [vmem:[%s7 + $0x98] sm:$0xff] %vm1753, %v1702
  %1774 = vst.msk [vmem:[%s7 + $0xa0] sm:$0xff] %vm1753, %v1707
  %1775 = vst.msk [vmem:[%s7 + $0xa8] sm:$0xff] %vm1753, %v1710
  %1776 = vst.msk [vmem:[%s7 + $0xb0] sm:$0xff] %vm1753, %v1715
  %1777 = vst.msk [vmem:[%s7 + $0xb8] sm:$0xff] %vm1753, %v1718
  %1778 = vst.msk [vmem:[%s7 + $0xc0] sm:$0xff] %vm1753, %v1723
  %1779 = vst.msk [vmem:[%s7 + $0xc8] sm:$0xff] %vm1753, %v1726
  %1780 = vst.msk [vmem:[%s7 + $0xd0] sm:$0xff] %vm1753, %v1731
  %1781 = vst.msk [vmem:[%s7 + $0xd8] sm:$0xff] %vm1753, %v1734
  %1782 = vst.msk [vmem:[%s7 + $0xe0] sm:$0xff] %vm1753, %v1739
  %1783 = vst.msk [vmem:[%s7 + $0xe8] sm:$0xff] %vm1753, %v1742
  %1784 = vst.msk [vmem:[%s7 + $0xf0] sm:$0xff] %vm1753, %v1747
  %1785 = vst.msk [vmem:[%s7 + $0xf8] sm:$0xff] %vm1753, %v1750
  // Predicated region
  $region30: #{tpu_custom_call.1} parent=0 // pred_check
    _
  $region31: #{tpu_custom_call.1} parent=0 // pred_check_branch
    %1787 = sbr.rel (0) target = $region33
  $region32: #{tpu_custom_call.1} parent=0 // pred_region
    _
  $region33: #{tpu_custom_call.1} parent=0 // pred_fallthru
    _
  // Predicated region
  $region34: #{tpu_custom_call.1} parent=0 // pred_check
    _
  $region35: #{tpu_custom_call.1} parent=0 // pred_check_branch
    %1789 = sbr.rel (0) target = $region37
  $region36: #{tpu_custom_call.1} parent=0 // pred_region
    _
  $region37: #{tpu_custom_call.1} parent=0 // pred_fallthru
    _

</llo_original>
